<compile_context>
chip_gen: v7x
topology: tpu7x:2x2x1
jax: 0.10.0
libtpu: 0.0.40
codegen_flags: <defaults>
</compile_context>

<pallas_src>
import functools
import math

import jax
import jax.numpy as jnp
from jax import lax
from jax.experimental import pallas as pl

# ----------------------------- small BERT config -----------------------------
VOCAB = 100
HIDDEN = 32
NUM_HEADS = 4
HEAD_DIM = HIDDEN // NUM_HEADS
INTERMEDIATE = 64
NUM_LAYERS = 2
MAX_POS = 16
NUM_LABELS = 18
LN_EPS = 1e-12
LANES = 128

ROWS_PER_LAYER = 3 * HIDDEN + INTERMEDIATE          # wqkv(32) + wo(32) + w1(32) + w2(64)
W_ROWS = NUM_LAYERS * ROWS_PER_LAYER + HIDDEN       # + cls_w(32)
V_ROWS = 24                                          # 2 + 8*NUM_LAYERS + 1, padded to x8


# ------------------------------- fused kernel -------------------------------
def _layer_norm(x, g, b, eps=LN_EPS):
    mu = jnp.mean(x, axis=-1, keepdims=True)
    var = jnp.mean((x - mu) * (x - mu), axis=-1, keepdims=True)
    return (x - mu) * lax.rsqrt(var + eps) * g + b


def _bert_fused_kernel(emb_ref, mask_ref, w_ref, v_ref, out_ref, *,
                       num_layers, num_heads, head_dim, hidden, inter):
    """Entire BERT forward on VMEM-resident operands; writes a dense (T,128) block."""
    T = emb_ref.shape[0]
    H = hidden
    scale = 1.0 / math.sqrt(head_dim)
    rows_per_layer = 3 * H + inter

    vv = v_ref[...]                     # (V_ROWS, 128) f32 bias/LN slab
    msk = mask_ref[...]                 # (num_heads*T, T) f32 additive mask

    # Embedding LayerNorm.
    h = _layer_norm(emb_ref[...], vv[0:1, :H], vv[1:2, :H])          # (T, H) f32

    for li in range(num_layers):                                     # static unroll
        r = li * rows_per_layer
        vb = 2 + li * 8
        wqkv = w_ref[r:r + H, :]                                     # (H,128) bf16
        wo = w_ref[r + H:r + 2 * H, :]                               # (H,128) bf16
        w1 = w_ref[r + 2 * H:r + 3 * H, :]                           # (H,128) bf16
        w2 = w_ref[r + 3 * H:r + 3 * H + inter, :]                   # (I,128) bf16

        # ---- fused QKV: one matmul for all heads and Q,K,V ----
        qkv = jnp.dot(h.astype(jnp.bfloat16), wqkv,
                      preferred_element_type=jnp.float32)[:, :3 * H]
        qkv = qkv + vv[vb:vb + 1, :3 * H]                            # (T, 3H) f32
        qkv_bf = qkv.astype(jnp.bfloat16)

        # ---- scores for all heads, stacked along sublanes ----
        s_blocks = []
        for hh in range(num_heads):
            qh = qkv_bf[:, hh * head_dim:(hh + 1) * head_dim]
            kh = qkv_bf[:, H + hh * head_dim:H + (hh + 1) * head_dim]
            s_blocks.append(
                lax.dot_general(qh, kh, (((1,), (1,)), ((), ())),
                                preferred_element_type=jnp.float32))  # (T, T)
        s_all = jnp.concatenate(s_blocks, axis=0) * scale + msk       # (nh*T, T)

        # ---- single softmax for all heads/batches (f32) ----
        s_all = s_all - jnp.max(s_all, axis=-1, keepdims=True)
        p = jnp.exp(s_all)
        p = p * pl.reciprocal(jnp.sum(p, axis=-1, keepdims=True), approx=True)
        p_bf = p.astype(jnp.bfloat16)

        # ---- per-head context, lane-concat, single Wo matmul ----
        ctx_blocks = []
        for hh in range(num_heads):
            vh = qkv_bf[:, 2 * H + hh * head_dim:2 * H + (hh + 1) * head_dim]
            ph = p_bf[hh * T:(hh + 1) * T, :]
            ctx_blocks.append(jnp.dot(ph, vh, preferred_element_type=jnp.float32))
        ctx = jnp.concatenate(ctx_blocks, axis=-1)                    # (T, H) f32

        attn = jnp.dot(ctx.astype(jnp.bfloat16), wo,
                       preferred_element_type=jnp.float32)[:, :H] + vv[vb + 1:vb + 2, :H]
        h = _layer_norm(attn + h, vv[vb + 2:vb + 3, :H], vv[vb + 3:vb + 4, :H])

        # ----------------------- feed-forward -----------------------
        ffn1 = jnp.dot(h.astype(jnp.bfloat16), w1,
                       preferred_element_type=jnp.float32)[:, :inter] + vv[vb + 4:vb + 5, :inter]
        # TODO(synk): HF BERT uses exact erf-GELU; tanh approximation used here.
        ffn1 = jax.nn.gelu(ffn1, approximate=True)
        ffn2 = jnp.dot(ffn1.astype(jnp.bfloat16), w2,
                       preferred_element_type=jnp.float32)[:, :H] + vv[vb + 5:vb + 6, :H]
        h = _layer_norm(ffn2 + h, vv[vb + 6:vb + 7, :H], vv[vb + 7:vb + 8, :H])

    # CLS head on the full token slab against 128-lane-padded weights -> dense store.
    cls_r = num_layers * rows_per_layer
    clsw = w_ref[cls_r:cls_r + H, :]                                  # (H,128) bf16
    clsb = vv[2 + num_layers * 8:3 + num_layers * 8, :]               # (1,128) f32
    logits = jnp.dot(h.astype(jnp.bfloat16), clsw,
                     preferred_element_type=jnp.float32) + clsb       # (T,128)
    out_ref[...] = logits.astype(out_ref.dtype)


def bert_forward_fused(emb, mask, wmat, vvec, batch, seq):
    T = batch * seq
    kernel = functools.partial(
        _bert_fused_kernel, num_layers=NUM_LAYERS, num_heads=NUM_HEADS,
        head_dim=HEAD_DIM, hidden=HIDDEN, inter=INTERMEDIATE)
    return pl.pallas_call(
        kernel,
        out_shape=jax.ShapeDtypeStruct((T, LANES), jnp.float32),
        cost_estimate=pl.CostEstimate(
            flops=1_600_000, transcendentals=5_000, bytes_accessed=130_000),
    )(emb, mask, wmat, vvec)


# ------------------------------ model composition ------------------------------
@jax.jit
def model_forward(input_ids, packed):
    B, S = input_ids.shape
    T = B * S

    # Additive attention mask over the fused (B*S) token slab:
    #   cross-batch entries -> -1e9, padded-key entries -> -10000 (BERT semantics).
    ids_flat = input_ids.reshape(T)
    key_bias = jnp.where(ids_flat == 0, -10000.0, 0.0)               # (T,)
    batch_idx = jnp.arange(T, dtype=jnp.int32) // S
    same = batch_idx[:, None] == batch_idx[None, :]
    mask = jnp.where(same, 0.0, -1e9) + key_bias[None, :]            # (T, T)
    mask = jnp.tile(mask, (NUM_HEADS, 1)).astype(jnp.float32)        # (nh*T, T)

    # Embedding gathers stay in plain JAX (glue); everything else is fused.
    we = packed["word_emb"][input_ids]                               # (B, S, H)
    pe = packed["pos_emb"][:S][None, :, :]
    te = packed["type_emb"][0][None, None, :]                        # token_type_ids == 0
    emb = (we + pe + te).reshape(T, HIDDEN).astype(jnp.float32)

    out = bert_forward_fused(emb, mask, packed["wmat"], packed["vvec"], B, S)
    return out.reshape(B, S, LANES)[:, 0, :NUM_LABELS]               # (B, NUM_LABELS)


# ------------------------------ parameter setup ------------------------------
def init_params(key):
    std = 0.02

    def nrm(k, shape):
        return jax.random.normal(k, shape, jnp.float32) * std

    keys = jax.random.split(key, 4 + NUM_LAYERS)
    params = {
        "word_emb": nrm(keys[0], (VOCAB, HIDDEN)),
        "pos_emb": nrm(keys[1], (MAX_POS, HIDDEN)),
        "type_emb": nrm(keys[2], (2, HIDDEN)),
        "emb_ln_g": jnp.ones((HIDDEN,), jnp.float32),
        "emb_ln_b": jnp.zeros((HIDDEN,), jnp.float32),
        "cls_w": nrm(keys[3], (HIDDEN, NUM_LABELS)),
        "cls_b": jnp.zeros((NUM_LABELS,), jnp.float32),
        "layers": [],
    }
    for li in range(NUM_LAYERS):
        lk = jax.random.split(keys[4 + li], 6)
        params["layers"].append({
            "wq": nrm(lk[0], (HIDDEN, HIDDEN)), "bq": jnp.zeros((HIDDEN,), jnp.float32),
            "wk": nrm(lk[1], (HIDDEN, HIDDEN)), "bk": jnp.zeros((HIDDEN,), jnp.float32),
            "wv": nrm(lk[2], (HIDDEN, HIDDEN)), "bv": jnp.zeros((HIDDEN,), jnp.float32),
            "wo": nrm(lk[3], (HIDDEN, HIDDEN)), "bo": jnp.zeros((HIDDEN,), jnp.float32),
            "ln1_g": jnp.ones((HIDDEN,), jnp.float32),
            "ln1_b": jnp.zeros((HIDDEN,), jnp.float32),
            "w1": nrm(lk[4], (HIDDEN, INTERMEDIATE)),
            "b1": jnp.zeros((INTERMEDIATE,), jnp.float32),
            "w2": nrm(lk[5], (INTERMEDIATE, HIDDEN)),
            "b2": jnp.zeros((HIDDEN,), jnp.float32),
            "ln2_g": jnp.ones((HIDDEN,), jnp.float32),
            "ln2_b": jnp.zeros((HIDDEN,), jnp.float32),
        })
    return params


def pack_params(params):
    """Pack all weights into two lane-dense slabs:
       - wmat: (W_ROWS, 128) bf16 matrix slab (QKV fused per layer, Wo, W1, W2, cls_w)
       - vvec: (V_ROWS, 128) f32  bias / LayerNorm slab (one row per vector)
    """
    wmat = jnp.zeros((W_ROWS, LANES), jnp.float32)
    vvec = jnp.zeros((V_ROWS, LANES), jnp.float32)

    def put(mat, r, block):
        return mat.at[r:r + block.shape[0], 0:block.shape[1]].set(block)

    vvec = put(vvec, 0, params["emb_ln_g"].reshape(1, HIDDEN))
    vvec = put(vvec, 1, params["emb_ln_b"].reshape(1, HIDDEN))

    for li, lyr in enumerate(params["layers"]):
        r = li * ROWS_PER_LAYER
        vb = 2 + li * 8
        wqkv = jnp.concatenate([lyr["wq"], lyr["wk"], lyr["wv"]], axis=1)   # (H, 3H)
        bqkv = jnp.concatenate([lyr["bq"], lyr["bk"], lyr["bv"]]).reshape(1, 3 * HIDDEN)
        wmat = put(wmat, r, wqkv)
        wmat = put(wmat, r + HIDDEN, lyr["wo"])
        wmat = put(wmat, r + 2 * HIDDEN, lyr["w1"])
        wmat = put(wmat, r + 3 * HIDDEN, lyr["w2"])
        vvec = put(vvec, vb + 0, bqkv)
        vvec = put(vvec, vb + 1, lyr["bo"].reshape(1, HIDDEN))
        vvec = put(vvec, vb + 2, lyr["ln1_g"].reshape(1, HIDDEN))
        vvec = put(vvec, vb + 3, lyr["ln1_b"].reshape(1, HIDDEN))
        vvec = put(vvec, vb + 4, lyr["b1"].reshape(1, INTERMEDIATE))
        vvec = put(vvec, vb + 5, lyr["b2"].reshape(1, HIDDEN))
        vvec = put(vvec, vb + 6, lyr["ln2_g"].reshape(1, HIDDEN))
        vvec = put(vvec, vb + 7, lyr["ln2_b"].reshape(1, HIDDEN))

    wmat = put(wmat, NUM_LAYERS * ROWS_PER_LAYER, params["cls_w"])
    vvec = put(vvec, 2 + NUM_LAYERS * 8, params["cls_b"].reshape(1, NUM_LABELS))

    return {
        "word_emb": params["word_emb"],
        "pos_emb": params["pos_emb"],
        "type_emb": params["type_emb"],
        "wmat": wmat.astype(jnp.bfloat16),
        "vvec": vvec,
    }


if __name__ == "__main__":
    B, S = 2, 8
    key = jax.random.PRNGKey(0)
    pkey, ikey = jax.random.split(key)

    params = init_params(pkey)
    packed = pack_params(params)

    input_ids = jax.random.randint(ikey, (B, S), minval=1, maxval=VOCAB,
                                   dtype=jnp.int32)
    input_ids = input_ids.at[1, 6:].set(0)   # padding -> exercises attention mask

    logits = model_forward(input_ids, packed)
    jax.block_until_ready(logits)
    assert logits.shape == (B, NUM_LABELS) and logits.dtype == jnp.float32
    print("KERNEL_OK")
</pallas_src>

<mosaic_0001>
module attributes {stable_mosaic.version = 11 : i64} {
  func.func @_bert_fused_kernel(%arg0: memref<16x32xf32, #tpu.memory_space<vmem>>, %arg1: memref<64x16xf32, #tpu.memory_space<vmem>>, %arg2: memref<352x128xbf16, #tpu.memory_space<vmem>>, %arg3: memref<24x128xf32, #tpu.memory_space<vmem>>, %arg4: memref<16x128xf32, #tpu.memory_space<vmem>>) attributes {dimension_semantics = [], scalar_prefetch = 0 : i64, scratch_operands = 0 : i64, tpu.core_type = #tpu.core_type<tc>} {
    %c0 = arith.constant 0 : index
    %c0_0 = arith.constant 0 : index
    %0 = vector.load %arg3[%c0, %c0_0] : memref<24x128xf32, #tpu.memory_space<vmem>>, vector<24x128xf32>
    %c0_1 = arith.constant 0 : index
    %c0_2 = arith.constant 0 : index
    %1 = vector.load %arg1[%c0_1, %c0_2] : memref<64x16xf32, #tpu.memory_space<vmem>>, vector<64x16xf32>
    %c0_3 = arith.constant 0 : index
    %c0_4 = arith.constant 0 : index
    %2 = vector.load %arg0[%c0_3, %c0_4] : memref<16x32xf32, #tpu.memory_space<vmem>>, vector<16x32xf32>
    %3 = vector.extract_strided_slice %0 {offsets = [0, 0], sizes = [1, 32], strides = [1, 1]} : vector<24x128xf32> to vector<1x32xf32>
    %4 = vector.extract_strided_slice %0 {offsets = [1, 0], sizes = [1, 32], strides = [1, 1]} : vector<24x128xf32> to vector<1x32xf32>
    %cst = arith.constant dense<0.000000e+00> : vector<16xf32>
    %5 = vector.multi_reduction <add>, %2, %cst [1] : vector<16x32xf32> to vector<16xf32>
    %6 = vector.shape_cast %5 : vector<16xf32> to vector<16x1xf32>
    %cst_5 = arith.constant 3.200000e+01 : f32
    %7 = vector.broadcast %cst_5 : f32 to vector<16x1xf32>
    %8 = arith.divf %6, %7 : vector<16x1xf32>
    %9 = vector.broadcast %8 : vector<16x1xf32> to vector<16x32xf32>
    %10 = arith.subf %2, %9 : vector<16x32xf32>
    %11 = vector.broadcast %8 : vector<16x1xf32> to vector<16x32xf32>
    %12 = arith.subf %2, %11 : vector<16x32xf32>
    %13 = arith.mulf %10, %12 : vector<16x32xf32>
    %cst_6 = arith.constant dense<0.000000e+00> : vector<16xf32>
    %14 = vector.multi_reduction <add>, %13, %cst_6 [1] : vector<16x32xf32> to vector<16xf32>
    %15 = vector.shape_cast %14 : vector<16xf32> to vector<16x1xf32>
    %cst_7 = arith.constant 3.200000e+01 : f32
    %16 = vector.broadcast %cst_7 : f32 to vector<16x1xf32>
    %17 = arith.divf %15, %16 : vector<16x1xf32>
    %18 = vector.broadcast %8 : vector<16x1xf32> to vector<16x32xf32>
    %19 = arith.subf %2, %18 : vector<16x32xf32>
    %cst_8 = arith.constant 9.99999996E-13 : f32
    %20 = vector.broadcast %cst_8 : f32 to vector<16x1xf32>
    %21 = arith.addf %17, %20 : vector<16x1xf32>
    %22 = math.rsqrt %21 : vector<16x1xf32>
    %23 = vector.broadcast %22 : vector<16x1xf32> to vector<16x32xf32>
    %24 = arith.mulf %19, %23 : vector<16x32xf32>
    %25 = vector.broadcast %3 : vector<1x32xf32> to vector<16x32xf32>
    %26 = arith.mulf %24, %25 : vector<16x32xf32>
    %27 = vector.broadcast %4 : vector<1x32xf32> to vector<16x32xf32>
    %28 = arith.addf %26, %27 : vector<16x32xf32>
    %c0_9 = arith.constant 0 : index
    %c0_10 = arith.constant 0 : index
    %29 = vector.load %arg2[%c0_9, %c0_10] : memref<352x128xbf16, #tpu.memory_space<vmem>>, vector<32x128xbf16>
    %c32 = arith.constant 32 : index
    %c0_11 = arith.constant 0 : index
    %30 = vector.load %arg2[%c32, %c0_11] : memref<352x128xbf16, #tpu.memory_space<vmem>>, vector<32x128xbf16>
    %c64 = arith.constant 64 : index
    %c0_12 = arith.constant 0 : index
    %31 = vector.load %arg2[%c64, %c0_12] : memref<352x128xbf16, #tpu.memory_space<vmem>>, vector<32x128xbf16>
    %c96 = arith.constant 96 : index
    %c0_13 = arith.constant 0 : index
    %32 = vector.load %arg2[%c96, %c0_13] : memref<352x128xbf16, #tpu.memory_space<vmem>>, vector<64x128xbf16>
    %33 = arith.truncf %28 : vector<16x32xf32> to vector<16x32xbf16>
    %cst_14 = arith.constant dense<0.000000e+00> : vector<16x128xf32>
    %34 = tpu.matmul %33, %29, %cst_14 {dimension_numbers = #tpu.dot_dimension_numbers<[1], [0], [0], [1], [0, 0, 1, 1], [], []>} : vector<16x32xbf16>, vector<32x128xbf16>, vector<16x128xf32> -> vector<16x128xf32>
    %35 = vector.extract_strided_slice %34 {offsets = [0, 0], sizes = [16, 96], strides = [1, 1]} : vector<16x128xf32> to vector<16x96xf32>
    %36 = vector.extract_strided_slice %0 {offsets = [2, 0], sizes = [1, 96], strides = [1, 1]} : vector<24x128xf32> to vector<1x96xf32>
    %37 = vector.broadcast %36 : vector<1x96xf32> to vector<16x96xf32>
    %38 = arith.addf %35, %37 : vector<16x96xf32>
    %39 = arith.truncf %38 : vector<16x96xf32> to vector<16x96xbf16>
    %40 = vector.extract_strided_slice %39 {offsets = [0, 0], sizes = [16, 8], strides = [1, 1]} : vector<16x96xbf16> to vector<16x8xbf16>
    %41 = vector.extract_strided_slice %39 {offsets = [0, 32], sizes = [16, 8], strides = [1, 1]} : vector<16x96xbf16> to vector<16x8xbf16>
    %cst_15 = arith.constant dense<0.000000e+00> : vector<16x16xf32>
    %42 = tpu.matmul %40, %41, %cst_15 {dimension_numbers = #tpu.dot_dimension_numbers<[1], [1], [0], [0], [0, 0, 1, 0], [], []>} : vector<16x8xbf16>, vector<16x8xbf16>, vector<16x16xf32> -> vector<16x16xf32>
    %43 = vector.extract_strided_slice %39 {offsets = [0, 8], sizes = [16, 8], strides = [1, 1]} : vector<16x96xbf16> to vector<16x8xbf16>
    %44 = vector.extract_strided_slice %39 {offsets = [0, 40], sizes = [16, 8], strides = [1, 1]} : vector<16x96xbf16> to vector<16x8xbf16>
    %cst_16 = arith.constant dense<0.000000e+00> : vector<16x16xf32>
    %45 = tpu.matmul %43, %44, %cst_16 {dimension_numbers = #tpu.dot_dimension_numbers<[1], [1], [0], [0], [0, 0, 1, 0], [], []>} : vector<16x8xbf16>, vector<16x8xbf16>, vector<16x16xf32> -> vector<16x16xf32>
    %46 = vector.extract_strided_slice %39 {offsets = [0, 16], sizes = [16, 8], strides = [1, 1]} : vector<16x96xbf16> to vector<16x8xbf16>
    %47 = vector.extract_strided_slice %39 {offsets = [0, 48], sizes = [16, 8], strides = [1, 1]} : vector<16x96xbf16> to vector<16x8xbf16>
    %cst_17 = arith.constant dense<0.000000e+00> : vector<16x16xf32>
    %48 = tpu.matmul %46, %47, %cst_17 {dimension_numbers = #tpu.dot_dimension_numbers<[1], [1], [0], [0], [0, 0, 1, 0], [], []>} : vector<16x8xbf16>, vector<16x8xbf16>, vector<16x16xf32> -> vector<16x16xf32>
    %49 = vector.extract_strided_slice %39 {offsets = [0, 24], sizes = [16, 8], strides = [1, 1]} : vector<16x96xbf16> to vector<16x8xbf16>
    %50 = vector.extract_strided_slice %39 {offsets = [0, 56], sizes = [16, 8], strides = [1, 1]} : vector<16x96xbf16> to vector<16x8xbf16>
    %cst_18 = arith.constant dense<0.000000e+00> : vector<16x16xf32>
    %51 = tpu.matmul %49, %50, %cst_18 {dimension_numbers = #tpu.dot_dimension_numbers<[1], [1], [0], [0], [0, 0, 1, 0], [], []>} : vector<16x8xbf16>, vector<16x8xbf16>, vector<16x16xf32> -> vector<16x16xf32>
    %52 = tpu.concatenate %42, %45, %48, %51 in 0 : vector<16x16xf32>, vector<16x16xf32>, vector<16x16xf32>, vector<16x16xf32> -> vector<64x16xf32>
    %cst_19 = arith.constant 0.353553385 : f32
    %53 = vector.broadcast %cst_19 : f32 to vector<64x16xf32>
    %54 = arith.mulf %52, %53 : vector<64x16xf32>
    %55 = arith.addf %54, %1 : vector<64x16xf32>
    %cst_20 = arith.constant dense<0xFF800000> : vector<64xf32>
    %56 = vector.multi_reduction <maximumf>, %55, %cst_20 [1] : vector<64x16xf32> to vector<64xf32>
    %57 = vector.shape_cast %56 : vector<64xf32> to vector<64x1xf32>
    %58 = vector.broadcast %57 : vector<64x1xf32> to vector<64x16xf32>
    %59 = arith.subf %55, %58 : vector<64x16xf32>
    %60 = math.exp %59 : vector<64x16xf32>
    %cst_21 = arith.constant dense<0.000000e+00> : vector<64xf32>
    %61 = vector.multi_reduction <add>, %60, %cst_21 [1] : vector<64x16xf32> to vector<64xf32>
    %62 = vector.shape_cast %61 : vector<64xf32> to vector<64x1xf32>
    %63 = tpu.reciprocal %62 {approx = true} : vector<64x1xf32> -> vector<64x1xf32>
    %64 = vector.broadcast %63 : vector<64x1xf32> to vector<64x16xf32>
    %65 = arith.mulf %60, %64 : vector<64x16xf32>
    %66 = arith.truncf %65 : vector<64x16xf32> to vector<64x16xbf16>
    %67 = vector.extract_strided_slice %39 {offsets = [0, 64], sizes = [16, 8], strides = [1, 1]} : vector<16x96xbf16> to vector<16x8xbf16>
    %68 = vector.extract_strided_slice %66 {offsets = [0, 0], sizes = [16, 16], strides = [1, 1]} : vector<64x16xbf16> to vector<16x16xbf16>
    %cst_22 = arith.constant dense<0.000000e+00> : vector<16x8xf32>
    %69 = tpu.matmul %68, %67, %cst_22 {dimension_numbers = #tpu.dot_dimension_numbers<[1], [0], [0], [1], [0, 0, 1, 1], [], []>} : vector<16x16xbf16>, vector<16x8xbf16>, vector<16x8xf32> -> vector<16x8xf32>
    %70 = vector.extract_strided_slice %39 {offsets = [0, 72], sizes = [16, 8], strides = [1, 1]} : vector<16x96xbf16> to vector<16x8xbf16>
    %71 = vector.extract_strided_slice %66 {offsets = [16, 0], sizes = [16, 16], strides = [1, 1]} : vector<64x16xbf16> to vector<16x16xbf16>
    %cst_23 = arith.constant dense<0.000000e+00> : vector<16x8xf32>
    %72 = tpu.matmul %71, %70, %cst_23 {dimension_numbers = #tpu.dot_dimension_numbers<[1], [0], [0], [1], [0, 0, 1, 1], [], []>} : vector<16x16xbf16>, vector<16x8xbf16>, vector<16x8xf32> -> vector<16x8xf32>
    %73 = vector.extract_strided_slice %39 {offsets = [0, 80], sizes = [16, 8], strides = [1, 1]} : vector<16x96xbf16> to vector<16x8xbf16>
    %74 = vector.extract_strided_slice %66 {offsets = [32, 0], sizes = [16, 16], strides = [1, 1]} : vector<64x16xbf16> to vector<16x16xbf16>
    %cst_24 = arith.constant dense<0.000000e+00> : vector<16x8xf32>
    %75 = tpu.matmul %74, %73, %cst_24 {dimension_numbers = #tpu.dot_dimension_numbers<[1], [0], [0], [1], [0, 0, 1, 1], [], []>} : vector<16x16xbf16>, vector<16x8xbf16>, vector<16x8xf32> -> vector<16x8xf32>
    %76 = vector.extract_strided_slice %39 {offsets = [0, 88], sizes = [16, 8], strides = [1, 1]} : vector<16x96xbf16> to vector<16x8xbf16>
    %77 = vector.extract_strided_slice %66 {offsets = [48, 0], sizes = [16, 16], strides = [1, 1]} : vector<64x16xbf16> to vector<16x16xbf16>
    %cst_25 = arith.constant dense<0.000000e+00> : vector<16x8xf32>
    %78 = tpu.matmul %77, %76, %cst_25 {dimension_numbers = #tpu.dot_dimension_numbers<[1], [0], [0], [1], [0, 0, 1, 1], [], []>} : vector<16x16xbf16>, vector<16x8xbf16>, vector<16x8xf32> -> vector<16x8xf32>
    %79 = tpu.concatenate %69, %72, %75, %78 in 1 : vector<16x8xf32>, vector<16x8xf32>, vector<16x8xf32>, vector<16x8xf32> -> vector<16x32xf32>
    %80 = arith.truncf %79 : vector<16x32xf32> to vector<16x32xbf16>
    %cst_26 = arith.constant dense<0.000000e+00> : vector<16x128xf32>
    %81 = tpu.matmul %80, %30, %cst_26 {dimension_numbers = #tpu.dot_dimension_numbers<[1], [0], [0], [1], [0, 0, 1, 1], [], []>} : vector<16x32xbf16>, vector<32x128xbf16>, vector<16x128xf32> -> vector<16x128xf32>
    %82 = vector.extract_strided_slice %81 {offsets = [0, 0], sizes = [16, 32], strides = [1, 1]} : vector<16x128xf32> to vector<16x32xf32>
    %83 = vector.extract_strided_slice %0 {offsets = [3, 0], sizes = [1, 32], strides = [1, 1]} : vector<24x128xf32> to vector<1x32xf32>
    %84 = vector.broadcast %83 : vector<1x32xf32> to vector<16x32xf32>
    %85 = arith.addf %82, %84 : vector<16x32xf32>
    %86 = arith.addf %85, %28 : vector<16x32xf32>
    %87 = vector.extract_strided_slice %0 {offsets = [4, 0], sizes = [1, 32], strides = [1, 1]} : vector<24x128xf32> to vector<1x32xf32>
    %88 = vector.extract_strided_slice %0 {offsets = [5, 0], sizes = [1, 32], strides = [1, 1]} : vector<24x128xf32> to vector<1x32xf32>
    %cst_27 = arith.constant dense<0.000000e+00> : vector<16xf32>
    %89 = vector.multi_reduction <add>, %86, %cst_27 [1] : vector<16x32xf32> to vector<16xf32>
    %90 = vector.shape_cast %89 : vector<16xf32> to vector<16x1xf32>
    %cst_28 = arith.constant 3.200000e+01 : f32
    %91 = vector.broadcast %cst_28 : f32 to vector<16x1xf32>
    %92 = arith.divf %90, %91 : vector<16x1xf32>
    %93 = vector.broadcast %92 : vector<16x1xf32> to vector<16x32xf32>
    %94 = arith.subf %86, %93 : vector<16x32xf32>
    %95 = vector.broadcast %92 : vector<16x1xf32> to vector<16x32xf32>
    %96 = arith.subf %86, %95 : vector<16x32xf32>
    %97 = arith.mulf %94, %96 : vector<16x32xf32>
    %cst_29 = arith.constant dense<0.000000e+00> : vector<16xf32>
    %98 = vector.multi_reduction <add>, %97, %cst_29 [1] : vector<16x32xf32> to vector<16xf32>
    %99 = vector.shape_cast %98 : vector<16xf32> to vector<16x1xf32>
    %cst_30 = arith.constant 3.200000e+01 : f32
    %100 = vector.broadcast %cst_30 : f32 to vector<16x1xf32>
    %101 = arith.divf %99, %100 : vector<16x1xf32>
    %102 = vector.broadcast %92 : vector<16x1xf32> to vector<16x32xf32>
    %103 = arith.subf %86, %102 : vector<16x32xf32>
    %cst_31 = arith.constant 9.99999996E-13 : f32
    %104 = vector.broadcast %cst_31 : f32 to vector<16x1xf32>
    %105 = arith.addf %101, %104 : vector<16x1xf32>
    %106 = math.rsqrt %105 : vector<16x1xf32>
    %107 = vector.broadcast %106 : vector<16x1xf32> to vector<16x32xf32>
    %108 = arith.mulf %103, %107 : vector<16x32xf32>
    %109 = vector.broadcast %87 : vector<1x32xf32> to vector<16x32xf32>
    %110 = arith.mulf %108, %109 : vector<16x32xf32>
    %111 = vector.broadcast %88 : vector<1x32xf32> to vector<16x32xf32>
    %112 = arith.addf %110, %111 : vector<16x32xf32>
    %113 = arith.truncf %112 : vector<16x32xf32> to vector<16x32xbf16>
    %cst_32 = arith.constant dense<0.000000e+00> : vector<16x128xf32>
    %114 = tpu.matmul %113, %31, %cst_32 {dimension_numbers = #tpu.dot_dimension_numbers<[1], [0], [0], [1], [0, 0, 1, 1], [], []>} : vector<16x32xbf16>, vector<32x128xbf16>, vector<16x128xf32> -> vector<16x128xf32>
    %115 = vector.extract_strided_slice %114 {offsets = [0, 0], sizes = [16, 64], strides = [1, 1]} : vector<16x128xf32> to vector<16x64xf32>
    %116 = vector.extract_strided_slice %0 {offsets = [6, 0], sizes = [1, 64], strides = [1, 1]} : vector<24x128xf32> to vector<1x64xf32>
    %117 = vector.broadcast %116 : vector<1x64xf32> to vector<16x64xf32>
    %118 = arith.addf %115, %117 : vector<16x64xf32>
    %119 = arith.mulf %118, %118 : vector<16x64xf32>
    %120 = arith.mulf %118, %119 : vector<16x64xf32>
    %cst_33 = arith.constant 4.471500e-02 : f32
    %121 = vector.broadcast %cst_33 : f32 to vector<16x64xf32>
    %122 = arith.mulf %121, %120 : vector<16x64xf32>
    %123 = arith.addf %118, %122 : vector<16x64xf32>
    %cst_34 = arith.constant 0.797884583 : f32
    %124 = vector.broadcast %cst_34 : f32 to vector<16x64xf32>
    %125 = arith.mulf %124, %123 : vector<16x64xf32>
    %126 = math.tanh %125 : vector<16x64xf32>
    %cst_35 = arith.constant 1.000000e+00 : f32
    %127 = vector.broadcast %cst_35 : f32 to vector<16x64xf32>
    %128 = arith.addf %127, %126 : vector<16x64xf32>
    %cst_36 = arith.constant 5.000000e-01 : f32
    %129 = vector.broadcast %cst_36 : f32 to vector<16x64xf32>
    %130 = arith.mulf %129, %128 : vector<16x64xf32>
    %131 = arith.mulf %118, %130 : vector<16x64xf32>
    %132 = arith.truncf %131 : vector<16x64xf32> to vector<16x64xbf16>
    %cst_37 = arith.constant dense<0.000000e+00> : vector<16x128xf32>
    %133 = tpu.matmul %132, %32, %cst_37 {dimension_numbers = #tpu.dot_dimension_numbers<[1], [0], [0], [1], [0, 0, 1, 1], [], []>} : vector<16x64xbf16>, vector<64x128xbf16>, vector<16x128xf32> -> vector<16x128xf32>
    %134 = vector.extract_strided_slice %133 {offsets = [0, 0], sizes = [16, 32], strides = [1, 1]} : vector<16x128xf32> to vector<16x32xf32>
    %135 = vector.extract_strided_slice %0 {offsets = [7, 0], sizes = [1, 32], strides = [1, 1]} : vector<24x128xf32> to vector<1x32xf32>
    %136 = vector.broadcast %135 : vector<1x32xf32> to vector<16x32xf32>
    %137 = arith.addf %134, %136 : vector<16x32xf32>
    %138 = arith.addf %137, %112 : vector<16x32xf32>
    %139 = vector.extract_strided_slice %0 {offsets = [8, 0], sizes = [1, 32], strides = [1, 1]} : vector<24x128xf32> to vector<1x32xf32>
    %140 = vector.extract_strided_slice %0 {offsets = [9, 0], sizes = [1, 32], strides = [1, 1]} : vector<24x128xf32> to vector<1x32xf32>
    %cst_38 = arith.constant dense<0.000000e+00> : vector<16xf32>
    %141 = vector.multi_reduction <add>, %138, %cst_38 [1] : vector<16x32xf32> to vector<16xf32>
    %142 = vector.shape_cast %141 : vector<16xf32> to vector<16x1xf32>
    %cst_39 = arith.constant 3.200000e+01 : f32
    %143 = vector.broadcast %cst_39 : f32 to vector<16x1xf32>
    %144 = arith.divf %142, %143 : vector<16x1xf32>
    %145 = vector.broadcast %144 : vector<16x1xf32> to vector<16x32xf32>
    %146 = arith.subf %138, %145 : vector<16x32xf32>
    %147 = vector.broadcast %144 : vector<16x1xf32> to vector<16x32xf32>
    %148 = arith.subf %138, %147 : vector<16x32xf32>
    %149 = arith.mulf %146, %148 : vector<16x32xf32>
    %cst_40 = arith.constant dense<0.000000e+00> : vector<16xf32>
    %150 = vector.multi_reduction <add>, %149, %cst_40 [1] : vector<16x32xf32> to vector<16xf32>
    %151 = vector.shape_cast %150 : vector<16xf32> to vector<16x1xf32>
    %cst_41 = arith.constant 3.200000e+01 : f32
    %152 = vector.broadcast %cst_41 : f32 to vector<16x1xf32>
    %153 = arith.divf %151, %152 : vector<16x1xf32>
    %154 = vector.broadcast %144 : vector<16x1xf32> to vector<16x32xf32>
    %155 = arith.subf %138, %154 : vector<16x32xf32>
    %cst_42 = arith.constant 9.99999996E-13 : f32
    %156 = vector.broadcast %cst_42 : f32 to vector<16x1xf32>
    %157 = arith.addf %153, %156 : vector<16x1xf32>
    %158 = math.rsqrt %157 : vector<16x1xf32>
    %159 = vector.broadcast %158 : vector<16x1xf32> to vector<16x32xf32>
    %160 = arith.mulf %155, %159 : vector<16x32xf32>
    %161 = vector.broadcast %139 : vector<1x32xf32> to vector<16x32xf32>
    %162 = arith.mulf %160, %161 : vector<16x32xf32>
    %163 = vector.broadcast %140 : vector<1x32xf32> to vector<16x32xf32>
    %164 = arith.addf %162, %163 : vector<16x32xf32>
    %c160 = arith.constant 160 : index
    %c0_43 = arith.constant 0 : index
    %165 = vector.load %arg2[%c160, %c0_43] : memref<352x128xbf16, #tpu.memory_space<vmem>>, vector<32x128xbf16>
    %c192 = arith.constant 192 : index
    %c0_44 = arith.constant 0 : index
    %166 = vector.load %arg2[%c192, %c0_44] : memref<352x128xbf16, #tpu.memory_space<vmem>>, vector<32x128xbf16>
    %c224 = arith.constant 224 : index
    %c0_45 = arith.constant 0 : index
    %167 = vector.load %arg2[%c224, %c0_45] : memref<352x128xbf16, #tpu.memory_space<vmem>>, vector<32x128xbf16>
    %c256 = arith.constant 256 : index
    %c0_46 = arith.constant 0 : index
    %168 = vector.load %arg2[%c256, %c0_46] : memref<352x128xbf16, #tpu.memory_space<vmem>>, vector<64x128xbf16>
    %169 = arith.truncf %164 : vector<16x32xf32> to vector<16x32xbf16>
    %cst_47 = arith.constant dense<0.000000e+00> : vector<16x128xf32>
    %170 = tpu.matmul %169, %165, %cst_47 {dimension_numbers = #tpu.dot_dimension_numbers<[1], [0], [0], [1], [0, 0, 1, 1], [], []>} : vector<16x32xbf16>, vector<32x128xbf16>, vector<16x128xf32> -> vector<16x128xf32>
    %171 = vector.extract_strided_slice %170 {offsets = [0, 0], sizes = [16, 96], strides = [1, 1]} : vector<16x128xf32> to vector<16x96xf32>
    %172 = vector.extract_strided_slice %0 {offsets = [10, 0], sizes = [1, 96], strides = [1, 1]} : vector<24x128xf32> to vector<1x96xf32>
    %173 = vector.broadcast %172 : vector<1x96xf32> to vector<16x96xf32>
    %174 = arith.addf %171, %173 : vector<16x96xf32>
    %175 = arith.truncf %174 : vector<16x96xf32> to vector<16x96xbf16>
    %176 = vector.extract_strided_slice %175 {offsets = [0, 0], sizes = [16, 8], strides = [1, 1]} : vector<16x96xbf16> to vector<16x8xbf16>
    %177 = vector.extract_strided_slice %175 {offsets = [0, 32], sizes = [16, 8], strides = [1, 1]} : vector<16x96xbf16> to vector<16x8xbf16>
    %cst_48 = arith.constant dense<0.000000e+00> : vector<16x16xf32>
    %178 = tpu.matmul %176, %177, %cst_48 {dimension_numbers = #tpu.dot_dimension_numbers<[1], [1], [0], [0], [0, 0, 1, 0], [], []>} : vector<16x8xbf16>, vector<16x8xbf16>, vector<16x16xf32> -> vector<16x16xf32>
    %179 = vector.extract_strided_slice %175 {offsets = [0, 8], sizes = [16, 8], strides = [1, 1]} : vector<16x96xbf16> to vector<16x8xbf16>
    %180 = vector.extract_strided_slice %175 {offsets = [0, 40], sizes = [16, 8], strides = [1, 1]} : vector<16x96xbf16> to vector<16x8xbf16>
    %cst_49 = arith.constant dense<0.000000e+00> : vector<16x16xf32>
    %181 = tpu.matmul %179, %180, %cst_49 {dimension_numbers = #tpu.dot_dimension_numbers<[1], [1], [0], [0], [0, 0, 1, 0], [], []>} : vector<16x8xbf16>, vector<16x8xbf16>, vector<16x16xf32> -> vector<16x16xf32>
    %182 = vector.extract_strided_slice %175 {offsets = [0, 16], sizes = [16, 8], strides = [1, 1]} : vector<16x96xbf16> to vector<16x8xbf16>
    %183 = vector.extract_strided_slice %175 {offsets = [0, 48], sizes = [16, 8], strides = [1, 1]} : vector<16x96xbf16> to vector<16x8xbf16>
    %cst_50 = arith.constant dense<0.000000e+00> : vector<16x16xf32>
    %184 = tpu.matmul %182, %183, %cst_50 {dimension_numbers = #tpu.dot_dimension_numbers<[1], [1], [0], [0], [0, 0, 1, 0], [], []>} : vector<16x8xbf16>, vector<16x8xbf16>, vector<16x16xf32> -> vector<16x16xf32>
    %185 = vector.extract_strided_slice %175 {offsets = [0, 24], sizes = [16, 8], strides = [1, 1]} : vector<16x96xbf16> to vector<16x8xbf16>
    %186 = vector.extract_strided_slice %175 {offsets = [0, 56], sizes = [16, 8], strides = [1, 1]} : vector<16x96xbf16> to vector<16x8xbf16>
    %cst_51 = arith.constant dense<0.000000e+00> : vector<16x16xf32>
    %187 = tpu.matmul %185, %186, %cst_51 {dimension_numbers = #tpu.dot_dimension_numbers<[1], [1], [0], [0], [0, 0, 1, 0], [], []>} : vector<16x8xbf16>, vector<16x8xbf16>, vector<16x16xf32> -> vector<16x16xf32>
    %188 = tpu.concatenate %178, %181, %184, %187 in 0 : vector<16x16xf32>, vector<16x16xf32>, vector<16x16xf32>, vector<16x16xf32> -> vector<64x16xf32>
    %cst_52 = arith.constant 0.353553385 : f32
    %189 = vector.broadcast %cst_52 : f32 to vector<64x16xf32>
    %190 = arith.mulf %188, %189 : vector<64x16xf32>
    %191 = arith.addf %190, %1 : vector<64x16xf32>
    %cst_53 = arith.constant dense<0xFF800000> : vector<64xf32>
    %192 = vector.multi_reduction <maximumf>, %191, %cst_53 [1] : vector<64x16xf32> to vector<64xf32>
    %193 = vector.shape_cast %192 : vector<64xf32> to vector<64x1xf32>
    %194 = vector.broadcast %193 : vector<64x1xf32> to vector<64x16xf32>
    %195 = arith.subf %191, %194 : vector<64x16xf32>
    %196 = math.exp %195 : vector<64x16xf32>
    %cst_54 = arith.constant dense<0.000000e+00> : vector<64xf32>
    %197 = vector.multi_reduction <add>, %196, %cst_54 [1] : vector<64x16xf32> to vector<64xf32>
    %198 = vector.shape_cast %197 : vector<64xf32> to vector<64x1xf32>
    %199 = tpu.reciprocal %198 {approx = true} : vector<64x1xf32> -> vector<64x1xf32>
    %200 = vector.broadcast %199 : vector<64x1xf32> to vector<64x16xf32>
    %201 = arith.mulf %196, %200 : vector<64x16xf32>
    %202 = arith.truncf %201 : vector<64x16xf32> to vector<64x16xbf16>
    %203 = vector.extract_strided_slice %175 {offsets = [0, 64], sizes = [16, 8], strides = [1, 1]} : vector<16x96xbf16> to vector<16x8xbf16>
    %204 = vector.extract_strided_slice %202 {offsets = [0, 0], sizes = [16, 16], strides = [1, 1]} : vector<64x16xbf16> to vector<16x16xbf16>
    %cst_55 = arith.constant dense<0.000000e+00> : vector<16x8xf32>
    %205 = tpu.matmul %204, %203, %cst_55 {dimension_numbers = #tpu.dot_dimension_numbers<[1], [0], [0], [1], [0, 0, 1, 1], [], []>} : vector<16x16xbf16>, vector<16x8xbf16>, vector<16x8xf32> -> vector<16x8xf32>
    %206 = vector.extract_strided_slice %175 {offsets = [0, 72], sizes = [16, 8], strides = [1, 1]} : vector<16x96xbf16> to vector<16x8xbf16>
    %207 = vector.extract_strided_slice %202 {offsets = [16, 0], sizes = [16, 16], strides = [1, 1]} : vector<64x16xbf16> to vector<16x16xbf16>
    %cst_56 = arith.constant dense<0.000000e+00> : vector<16x8xf32>
    %208 = tpu.matmul %207, %206, %cst_56 {dimension_numbers = #tpu.dot_dimension_numbers<[1], [0], [0], [1], [0, 0, 1, 1], [], []>} : vector<16x16xbf16>, vector<16x8xbf16>, vector<16x8xf32> -> vector<16x8xf32>
    %209 = vector.extract_strided_slice %175 {offsets = [0, 80], sizes = [16, 8], strides = [1, 1]} : vector<16x96xbf16> to vector<16x8xbf16>
    %210 = vector.extract_strided_slice %202 {offsets = [32, 0], sizes = [16, 16], strides = [1, 1]} : vector<64x16xbf16> to vector<16x16xbf16>
    %cst_57 = arith.constant dense<0.000000e+00> : vector<16x8xf32>
    %211 = tpu.matmul %210, %209, %cst_57 {dimension_numbers = #tpu.dot_dimension_numbers<[1], [0], [0], [1], [0, 0, 1, 1], [], []>} : vector<16x16xbf16>, vector<16x8xbf16>, vector<16x8xf32> -> vector<16x8xf32>
    %212 = vector.extract_strided_slice %175 {offsets = [0, 88], sizes = [16, 8], strides = [1, 1]} : vector<16x96xbf16> to vector<16x8xbf16>
    %213 = vector.extract_strided_slice %202 {offsets = [48, 0], sizes = [16, 16], strides = [1, 1]} : vector<64x16xbf16> to vector<16x16xbf16>
    %cst_58 = arith.constant dense<0.000000e+00> : vector<16x8xf32>
    %214 = tpu.matmul %213, %212, %cst_58 {dimension_numbers = #tpu.dot_dimension_numbers<[1], [0], [0], [1], [0, 0, 1, 1], [], []>} : vector<16x16xbf16>, vector<16x8xbf16>, vector<16x8xf32> -> vector<16x8xf32>
    %215 = tpu.concatenate %205, %208, %211, %214 in 1 : vector<16x8xf32>, vector<16x8xf32>, vector<16x8xf32>, vector<16x8xf32> -> vector<16x32xf32>
    %216 = arith.truncf %215 : vector<16x32xf32> to vector<16x32xbf16>
    %cst_59 = arith.constant dense<0.000000e+00> : vector<16x128xf32>
    %217 = tpu.matmul %216, %166, %cst_59 {dimension_numbers = #tpu.dot_dimension_numbers<[1], [0], [0], [1], [0, 0, 1, 1], [], []>} : vector<16x32xbf16>, vector<32x128xbf16>, vector<16x128xf32> -> vector<16x128xf32>
    %218 = vector.extract_strided_slice %217 {offsets = [0, 0], sizes = [16, 32], strides = [1, 1]} : vector<16x128xf32> to vector<16x32xf32>
    %219 = vector.extract_strided_slice %0 {offsets = [11, 0], sizes = [1, 32], strides = [1, 1]} : vector<24x128xf32> to vector<1x32xf32>
    %220 = vector.broadcast %219 : vector<1x32xf32> to vector<16x32xf32>
    %221 = arith.addf %218, %220 : vector<16x32xf32>
    %222 = arith.addf %221, %164 : vector<16x32xf32>
    %223 = vector.extract_strided_slice %0 {offsets = [12, 0], sizes = [1, 32], strides = [1, 1]} : vector<24x128xf32> to vector<1x32xf32>
    %224 = vector.extract_strided_slice %0 {offsets = [13, 0], sizes = [1, 32], strides = [1, 1]} : vector<24x128xf32> to vector<1x32xf32>
    %cst_60 = arith.constant dense<0.000000e+00> : vector<16xf32>
    %225 = vector.multi_reduction <add>, %222, %cst_60 [1] : vector<16x32xf32> to vector<16xf32>
    %226 = vector.shape_cast %225 : vector<16xf32> to vector<16x1xf32>
    %cst_61 = arith.constant 3.200000e+01 : f32
    %227 = vector.broadcast %cst_61 : f32 to vector<16x1xf32>
    %228 = arith.divf %226, %227 : vector<16x1xf32>
    %229 = vector.broadcast %228 : vector<16x1xf32> to vector<16x32xf32>
    %230 = arith.subf %222, %229 : vector<16x32xf32>
    %231 = vector.broadcast %228 : vector<16x1xf32> to vector<16x32xf32>
    %232 = arith.subf %222, %231 : vector<16x32xf32>
    %233 = arith.mulf %230, %232 : vector<16x32xf32>
    %cst_62 = arith.constant dense<0.000000e+00> : vector<16xf32>
    %234 = vector.multi_reduction <add>, %233, %cst_62 [1] : vector<16x32xf32> to vector<16xf32>
    %235 = vector.shape_cast %234 : vector<16xf32> to vector<16x1xf32>
    %cst_63 = arith.constant 3.200000e+01 : f32
    %236 = vector.broadcast %cst_63 : f32 to vector<16x1xf32>
    %237 = arith.divf %235, %236 : vector<16x1xf32>
    %238 = vector.broadcast %228 : vector<16x1xf32> to vector<16x32xf32>
    %239 = arith.subf %222, %238 : vector<16x32xf32>
    %cst_64 = arith.constant 9.99999996E-13 : f32
    %240 = vector.broadcast %cst_64 : f32 to vector<16x1xf32>
    %241 = arith.addf %237, %240 : vector<16x1xf32>
    %242 = math.rsqrt %241 : vector<16x1xf32>
    %243 = vector.broadcast %242 : vector<16x1xf32> to vector<16x32xf32>
    %244 = arith.mulf %239, %243 : vector<16x32xf32>
    %245 = vector.broadcast %223 : vector<1x32xf32> to vector<16x32xf32>
    %246 = arith.mulf %244, %245 : vector<16x32xf32>
    %247 = vector.broadcast %224 : vector<1x32xf32> to vector<16x32xf32>
    %248 = arith.addf %246, %247 : vector<16x32xf32>
    %249 = arith.truncf %248 : vector<16x32xf32> to vector<16x32xbf16>
    %cst_65 = arith.constant dense<0.000000e+00> : vector<16x128xf32>
    %250 = tpu.matmul %249, %167, %cst_65 {dimension_numbers = #tpu.dot_dimension_numbers<[1], [0], [0], [1], [0, 0, 1, 1], [], []>} : vector<16x32xbf16>, vector<32x128xbf16>, vector<16x128xf32> -> vector<16x128xf32>
    %251 = vector.extract_strided_slice %250 {offsets = [0, 0], sizes = [16, 64], strides = [1, 1]} : vector<16x128xf32> to vector<16x64xf32>
    %252 = vector.extract_strided_slice %0 {offsets = [14, 0], sizes = [1, 64], strides = [1, 1]} : vector<24x128xf32> to vector<1x64xf32>
    %253 = vector.broadcast %252 : vector<1x64xf32> to vector<16x64xf32>
    %254 = arith.addf %251, %253 : vector<16x64xf32>
    %255 = arith.mulf %254, %254 : vector<16x64xf32>
    %256 = arith.mulf %254, %255 : vector<16x64xf32>
    %cst_66 = arith.constant 4.471500e-02 : f32
    %257 = vector.broadcast %cst_66 : f32 to vector<16x64xf32>
    %258 = arith.mulf %257, %256 : vector<16x64xf32>
    %259 = arith.addf %254, %258 : vector<16x64xf32>
    %cst_67 = arith.constant 0.797884583 : f32
    %260 = vector.broadcast %cst_67 : f32 to vector<16x64xf32>
    %261 = arith.mulf %260, %259 : vector<16x64xf32>
    %262 = math.tanh %261 : vector<16x64xf32>
    %cst_68 = arith.constant 1.000000e+00 : f32
    %263 = vector.broadcast %cst_68 : f32 to vector<16x64xf32>
    %264 = arith.addf %263, %262 : vector<16x64xf32>
    %cst_69 = arith.constant 5.000000e-01 : f32
    %265 = vector.broadcast %cst_69 : f32 to vector<16x64xf32>
    %266 = arith.mulf %265, %264 : vector<16x64xf32>
    %267 = arith.mulf %254, %266 : vector<16x64xf32>
    %268 = arith.truncf %267 : vector<16x64xf32> to vector<16x64xbf16>
    %cst_70 = arith.constant dense<0.000000e+00> : vector<16x128xf32>
    %269 = tpu.matmul %268, %168, %cst_70 {dimension_numbers = #tpu.dot_dimension_numbers<[1], [0], [0], [1], [0, 0, 1, 1], [], []>} : vector<16x64xbf16>, vector<64x128xbf16>, vector<16x128xf32> -> vector<16x128xf32>
    %270 = vector.extract_strided_slice %269 {offsets = [0, 0], sizes = [16, 32], strides = [1, 1]} : vector<16x128xf32> to vector<16x32xf32>
    %271 = vector.extract_strided_slice %0 {offsets = [15, 0], sizes = [1, 32], strides = [1, 1]} : vector<24x128xf32> to vector<1x32xf32>
    %272 = vector.broadcast %271 : vector<1x32xf32> to vector<16x32xf32>
    %273 = arith.addf %270, %272 : vector<16x32xf32>
    %274 = arith.addf %273, %248 : vector<16x32xf32>
    %275 = vector.extract_strided_slice %0 {offsets = [16, 0], sizes = [1, 32], strides = [1, 1]} : vector<24x128xf32> to vector<1x32xf32>
    %276 = vector.extract_strided_slice %0 {offsets = [17, 0], sizes = [1, 32], strides = [1, 1]} : vector<24x128xf32> to vector<1x32xf32>
    %cst_71 = arith.constant dense<0.000000e+00> : vector<16xf32>
    %277 = vector.multi_reduction <add>, %274, %cst_71 [1] : vector<16x32xf32> to vector<16xf32>
    %278 = vector.shape_cast %277 : vector<16xf32> to vector<16x1xf32>
    %cst_72 = arith.constant 3.200000e+01 : f32
    %279 = vector.broadcast %cst_72 : f32 to vector<16x1xf32>
    %280 = arith.divf %278, %279 : vector<16x1xf32>
    %281 = vector.broadcast %280 : vector<16x1xf32> to vector<16x32xf32>
    %282 = arith.subf %274, %281 : vector<16x32xf32>
    %283 = vector.broadcast %280 : vector<16x1xf32> to vector<16x32xf32>
    %284 = arith.subf %274, %283 : vector<16x32xf32>
    %285 = arith.mulf %282, %284 : vector<16x32xf32>
    %cst_73 = arith.constant dense<0.000000e+00> : vector<16xf32>
    %286 = vector.multi_reduction <add>, %285, %cst_73 [1] : vector<16x32xf32> to vector<16xf32>
    %287 = vector.shape_cast %286 : vector<16xf32> to vector<16x1xf32>
    %cst_74 = arith.constant 3.200000e+01 : f32
    %288 = vector.broadcast %cst_74 : f32 to vector<16x1xf32>
    %289 = arith.divf %287, %288 : vector<16x1xf32>
    %290 = vector.broadcast %280 : vector<16x1xf32> to vector<16x32xf32>
    %291 = arith.subf %274, %290 : vector<16x32xf32>
    %cst_75 = arith.constant 9.99999996E-13 : f32
    %292 = vector.broadcast %cst_75 : f32 to vector<16x1xf32>
    %293 = arith.addf %289, %292 : vector<16x1xf32>
    %294 = math.rsqrt %293 : vector<16x1xf32>
    %295 = vector.broadcast %294 : vector<16x1xf32> to vector<16x32xf32>
    %296 = arith.mulf %291, %295 : vector<16x32xf32>
    %297 = vector.broadcast %275 : vector<1x32xf32> to vector<16x32xf32>
    %298 = arith.mulf %296, %297 : vector<16x32xf32>
    %299 = vector.broadcast %276 : vector<1x32xf32> to vector<16x32xf32>
    %300 = arith.addf %298, %299 : vector<16x32xf32>
    %c320 = arith.constant 320 : index
    %c0_76 = arith.constant 0 : index
    %301 = vector.load %arg2[%c320, %c0_76] : memref<352x128xbf16, #tpu.memory_space<vmem>>, vector<32x128xbf16>
    %302 = vector.extract_strided_slice %0 {offsets = [18, 0], sizes = [1, 128], strides = [1, 1]} : vector<24x128xf32> to vector<1x128xf32>
    %303 = arith.truncf %300 : vector<16x32xf32> to vector<16x32xbf16>
    %cst_77 = arith.constant dense<0.000000e+00> : vector<16x128xf32>
    %304 = tpu.matmul %303, %301, %cst_77 {dimension_numbers = #tpu.dot_dimension_numbers<[1], [0], [0], [1], [0, 0, 1, 1], [], []>} : vector<16x32xbf16>, vector<32x128xbf16>, vector<16x128xf32> -> vector<16x128xf32>
    %305 = vector.broadcast %302 : vector<1x128xf32> to vector<16x128xf32>
    %306 = arith.addf %304, %305 : vector<16x128xf32>
    %c0_78 = arith.constant 0 : index
    %c0_79 = arith.constant 0 : index
    %307 = vector.load %arg4[%c0_78, %c0_79] : memref<16x128xf32, #tpu.memory_space<vmem>>, vector<16x128xf32>
    tpu.vector_store %arg4[%c0_78, %c0_79], %306 {strides = array<i32>} : memref<16x128xf32, #tpu.memory_space<vmem>>, vector<16x128xf32>,
    return
  }
}

</mosaic_0001>

<llo_original>
// kernel: model_forward.1
$region0: #{model_forward.1}
  #allocation0 [shape = 'u32[]', space=smem, size = 0x4, offset = 0x4, fixed_abs, tag = 'smem constant byte address 0x4 - core index']
  #allocation1 [shape = 'u32[144,128]{1,0:T(1,128)}', space=vmem, size = 0x12000, scoped, tag = 'internal scratch']
  %s0 = inlined_call_operand.vmem [shape: f32[16,32], index: 0, kind: input, shape index: {}]
  %s1 = inlined_call_operand.vmem [shape: f32[64,16], index: 1, kind: input, shape index: {}]
  %s2 = inlined_call_operand.vmem [shape: bf16[352,128], index: 2, kind: input, shape index: {}]
  %s3 = inlined_call_operand.vmem [shape: f32[24,128], index: 3, kind: input, shape index: {}]
  %s4 = inlined_call_operand.vmem [shape: f32[16,128], index: 4, kind: output, shape index: {}]
  %s5 = sld [smem:[#allocation0]]
  $region26: #{model_forward.1} parent=0
    _
  %s7 = ssub.s32 1, %s5
  %s8 = scalar_select 0, %s7, %s5
  // Predicated region
  $region2: #{model_forward.1} parent=0 // pred_check
    _
  $region3: #{model_forward.1} parent=0 // pred_check_branch
    %10 = sbr.rel (0) target = $region5
  $region4: #{model_forward.1} parent=0 // pred_region
    _
  $region5: #{model_forward.1} parent=0 // pred_fallthru
    _
  // Predicated region
  $region6: #{model_forward.1} parent=0 // pred_check
    _
  $region7: #{model_forward.1} parent=0 // pred_check_branch
    %12 = sbr.rel (0) target = $region9
  $region8: #{model_forward.1} parent=0 // pred_region
    _
  $region9: #{model_forward.1} parent=0 // pred_fallthru
    _
  // Predicated region
  $region10: #{model_forward.1} parent=0 // pred_check
    _
  $region11: #{model_forward.1} parent=0 // pred_check_branch
    %14 = sbr.rel (0) target = $region13
  $region12: #{model_forward.1} parent=0 // pred_region
    _
  $region13: #{model_forward.1} parent=0 // pred_fallthru
    _
  // Predicated region
  $region14: #{model_forward.1} parent=0 // pred_check
    _
  $region15: #{model_forward.1} parent=0 // pred_check_branch
    %16 = sbr.rel (0) target = $region17
  $region16: #{model_forward.1} parent=0 // pred_region
    _
  $region17: #{model_forward.1} parent=0 // pred_fallthru
    _
  %v18 = vld [vmem:[%s3] sm:$0xff]
  %v19 = vld [vmem:[%s3 + $0x8] sm:$0xff]
  %v20 = vld [vmem:[%s3 + $0x10] sm:$0xff]
  %v21 = vld [vmem:[%s1] sm:$0xff]
  %v22 = vld [vmem:[%s1 + $0x8] sm:$0xff]
  %v23 = vld [vmem:[%s1 + $0x10] sm:$0xff]
  %v24 = vld [vmem:[%s1 + $0x18] sm:$0xff]
  %v25 = vld [vmem:[%s1 + $0x20] sm:$0xff]
  %v26 = vld [vmem:[%s1 + $0x28] sm:$0xff]
  %v27 = vld [vmem:[%s1 + $0x30] sm:$0xff]
  %v28 = vld [vmem:[%s1 + $0x38] sm:$0xff]
  %v29 = vld [vmem:[%s0] sm:$0xff]
  %v30 = vld [vmem:[%s0 + $0x8] sm:$0xff]
  %vm31 = vcmask 261120
  %v32 = vsel %vm31, %v29, 0.0
  %33 = vadd.xlane.f32.xlu0 %v32
  %v34 = vpop.xlane.xlu0 %33
  %v35 = vsel %vm31, %v30, 0.0
  %36 = vadd.xlane.f32.xlu0 %v35
  %v37 = vpop.xlane.xlu0 %36
  %v38 = vrcp.pop 32.0
  %v39 = vmul.f32 %v34, %v38
  %v40 = vmul.f32 %v37, %v38
  %v41 = vsub.f32 %v29, %v39
  %v42 = vsub.f32 %v30, %v40
  %v43 = vmul.f32 %v41, %v41
  %v44 = vmul.f32 %v42, %v42
  %v45 = vsel %vm31, %v43, 0.0
  %46 = vadd.xlane.f32.xlu0 %v45
  %v47 = vpop.xlane.xlu0 %46
  %v48 = vsel %vm31, %v44, 0.0
  %49 = vadd.xlane.f32.xlu0 %v48
  %v50 = vpop.xlane.xlu0 %49
  %v51 = vmul.f32 %v47, %v38
  %v52 = vmul.f32 %v50, %v38
  %v53 = vadd.f32 %v51, 1e-12
  %v54 = vadd.f32 %v52, 1e-12
  %v55 = vrsqrt.pop %v53
  %v56 = vrsqrt.pop %v54
  %v57 = vmul.f32 %v41, %v55
  %v58 = vmul.f32 %v42, %v56
  %v59 = vlaneseq
  %v60 = vshrl.u32 %v59, 7
  %v61 = vsub.s32 0, %v60
  %v62 = vrot.slane %v18, %v61
  %v63 = vmul.f32 %v57, %v62
  %v64 = vmul.f32 %v58, %v62
  %v65 = vlaneseq
  %v66 = vshrl.u32 %v65, 7
  %v67 = vsub.s32 1, %v66
  %v68 = vrot.slane %v18, %v67
  %v69 = vadd.f32 %v63, %v68
  %v70 = vadd.f32 %v64, %v68
  %v71 = vld [vmem:[%s2] sm:$0xf]
  %v72 = vld [vmem:[%s2 + $0x4] sm:$0xf]
  %v73 = vld [vmem:[%s2 + $0x8] sm:$0xf]
  %v74 = vld [vmem:[%s2 + $0xc] sm:$0xf]
  %v75 = vld [vmem:[%s2 + $0x10] sm:$0xf]
  %v76 = vld [vmem:[%s2 + $0x14] sm:$0xf]
  %v77 = vld [vmem:[%s2 + $0x18] sm:$0xf]
  %v78 = vld [vmem:[%s2 + $0x1c] sm:$0xf]
  %v79 = vld [vmem:[%s2 + $0x20] sm:$0xf]
  %v80 = vld [vmem:[%s2 + $0x24] sm:$0xf]
  %v81 = vld [vmem:[%s2 + $0x28] sm:$0xf]
  %v82 = vld [vmem:[%s2 + $0x2c] sm:$0xf]
  %v83 = vld [vmem:[%s2 + $0x30] sm:$0xf]
  %v84 = vld [vmem:[%s2 + $0x34] sm:$0xf]
  %v85 = vld [vmem:[%s2 + $0x38] sm:$0xf]
  %v86 = vld [vmem:[%s2 + $0x3c] sm:$0xf]
  %v87 = vld [vmem:[%s2 + $0x40] sm:$0xf]
  %v88 = vld [vmem:[%s2 + $0x44] sm:$0xf]
  %v89 = vld [vmem:[%s2 + $0x48] sm:$0xf]
  %v90 = vld [vmem:[%s2 + $0x4c] sm:$0xf]
  %v91 = vpack.c.bf16 %v70, %v69
  %v96 = vunpack.c.l.b16 %v71
  %v97 = vunpack.c.l.b16 %v72
  %v98 = vunpack.c.l.b16 %v73
  %v99 = vunpack.c.l.b16 %v74
  %v100 = vpack.c.b16 %v97, %v96
  %v101 = vpack.c.b16 %v99, %v98
  %v105 = vsel %vm31, %v91, 0
  %107 = vmatprep.subr.bf16.mxu0 0
  %108 = vmatpush1.bf16.msra.mxu0 %v100
  %109 = vmatprep.subr.bf16.mxu0 0
  %110 = vmatpush1.bf16.msra.mxu0 %v101
  %111 = vmatprep.subr.bf16.mxu0 0
  %112 = vmatpush1.bf16.msra.mxu0 0
  %113 = vmatprep.subr.bf16.mxu0 0
  %114 = vmatpush1.bf16.msra.mxu0 0
  %115 = vmatprep.subr.bf16.mxu0 0
  %116 = vmatpush1.bf16.msra.mxu0 0
  %117 = vmatprep.subr.bf16.mxu0 0
  %118 = vmatpush1.bf16.msra.mxu0 0
  %119 = vmatprep.subr.bf16.mxu0 0
  %120 = vmatpush1.bf16.msra.mxu0 0
  %121 = vmatprep.subr.bf16.mxu0 0
  %122 = vmatpush1.bf16.msra.mxu0 0
  %123 = vmatprep.subr.bf16.mxu0 0
  %124 = vmatpush1.bf16.msra.mxu0 0
  %125 = vmatprep.subr.bf16.mxu0 0
  %126 = vmatpush1.bf16.msra.mxu0 0
  %127 = vmatprep.subr.bf16.mxu0 0
  %128 = vmatpush1.bf16.msra.mxu0 0
  %129 = vmatprep.subr.bf16.mxu0 0
  %130 = vmatpush1.bf16.msra.mxu0 0
  %131 = vmatprep.subr.bf16.mxu0 0
  %132 = vmatpush1.bf16.msra.mxu0 0
  %133 = vmatprep.subr.bf16.mxu0 0
  %134 = vmatpush1.bf16.msra.mxu0 0
  %135 = vmatprep.subr.bf16.mxu0 0
  %136 = vmatpush1.bf16.msra.mxu0 0
  %137 = vmatprep.subr.bf16.mxu0 0
  %138 = vmatpush1.bf16.msra.mxu0 0
  %139 = vmatprep.mubr.bf16.mxu0 0
  %140 = vmatmul.mubr.bf16.gmra.mrb[0].mxu0 %v105
  %v141 = vpop.f32.mrb[0].mxu0
  %v142 = vadd.f32 0.0, %v141
  %v143 = vpop.f32.mrb[0].mxu0
  %v144 = vpop.f32.mrb[0].mxu0
  %v145 = vadd.f32 0.0, %v144
  %v146 = vpop.f32.mrb[0].mxu0
  %147 = vdwg.mxu0
  %v148 = vlaneseq
  %v149 = vshrl.u32 %v148, 7
  %v150 = vsub.s32 2, %v149
  %v151 = vrot.slane %v18, %v150
  %v152 = vadd.f32 %v142, %v151
  %v153 = vadd.f32 %v145, %v151
  %v154 = vpack.c.bf16 %v153, %v152
  %156 = vrot.lane.b32.xlu0 %v154, 96
  %v157 = vpop.permute.xlu0 %156
  %vm158 = vcmask 64512
  %v160 = vsel %vm158, %v154, 0
  %v163 = vsel %vm158, %v157, 0
  %165 = vmatprep.subr.bf16.mxu0 0
  %166 = vmatpush1.bf16.xpose.msra.mxu0 %v163
  %167 = vmatprep.subr.bf16.mxu0 0
  %168 = vmatpush1.bf16.xpose.msra.mxu0 0
  %169 = vmatprep.subr.bf16.mxu0 0
  %170 = vmatpush1.bf16.xpose.msra.mxu0 0
  %171 = vmatprep.subr.bf16.mxu0 0
  %172 = vmatpush1.bf16.xpose.msra.mxu0 0
  %173 = vmatprep.subr.bf16.mxu0 0
  %174 = vmatpush1.bf16.xpose.msra.mxu0 0
  %175 = vmatprep.subr.bf16.mxu0 0
  %176 = vmatpush1.bf16.xpose.msra.mxu0 0
  %177 = vmatprep.subr.bf16.mxu0 0
  %178 = vmatpush1.bf16.xpose.msra.mxu0 0
  %179 = vmatprep.subr.bf16.mxu0 0
  %180 = vmatpush1.bf16.xpose.msra.mxu0 0
  %181 = vmatprep.subr.bf16.mxu0 0
  %182 = vmatpush1.bf16.xpose.msra.mxu0 0
  %183 = vmatprep.subr.bf16.mxu0 0
  %184 = vmatpush1.bf16.xpose.msra.mxu0 0
  %185 = vmatprep.subr.bf16.mxu0 0
  %186 = vmatpush1.bf16.xpose.msra.mxu0 0
  %187 = vmatprep.subr.bf16.mxu0 0
  %188 = vmatpush1.bf16.xpose.msra.mxu0 0
  %189 = vmatprep.subr.bf16.mxu0 0
  %190 = vmatpush1.bf16.xpose.msra.mxu0 0
  %191 = vmatprep.subr.bf16.mxu0 0
  %192 = vmatpush1.bf16.xpose.msra.mxu0 0
  %193 = vmatprep.subr.bf16.mxu0 0
  %194 = vmatpush1.bf16.xpose.msra.mxu0 0
  %195 = vmatprep.subr.bf16.mxu0 0
  %196 = vmatpush1.bf16.xpose.msra.mxu0 0
  %197 = vmatprep.mubr.bf16.mxu0 0
  %198 = vmatmul.mubr.bf16.gmra.mrb[0].mxu0 %v160
  %v199 = vpop.f32.mrb[0].mxu0
  %v200 = vadd.f32 0.0, %v199
  %v201 = vpop.f32.mrb[0].mxu0
  %v202 = vpop.f32.mrb[0].mxu0
  %v203 = vadd.f32 0.0, %v202
  %v204 = vpop.f32.mrb[0].mxu0
  %205 = vdwg.mxu0
  %206 = vrot.lane.b32.xlu0 %v154, 120
  %v207 = vpop.permute.xlu0 %206
  %208 = vrot.lane.b32.xlu0 %v154, 88
  %v209 = vpop.permute.xlu0 %208
  %v211 = vsel %vm158, %v207, 0
  %v214 = vsel %vm158, %v209, 0
  %216 = vmatprep.subr.bf16.mxu0 0
  %217 = vmatpush1.bf16.xpose.msra.mxu0 %v214
  %218 = vmatprep.subr.bf16.mxu0 0
  %219 = vmatpush1.bf16.xpose.msra.mxu0 0
  %220 = vmatprep.subr.bf16.mxu0 0
  %221 = vmatpush1.bf16.xpose.msra.mxu0 0
  %222 = vmatprep.subr.bf16.mxu0 0
  %223 = vmatpush1.bf16.xpose.msra.mxu0 0
  %224 = vmatprep.subr.bf16.mxu0 0
  %225 = vmatpush1.bf16.xpose.msra.mxu0 0
  %226 = vmatprep.subr.bf16.mxu0 0
  %227 = vmatpush1.bf16.xpose.msra.mxu0 0
  %228 = vmatprep.subr.bf16.mxu0 0
  %229 = vmatpush1.bf16.xpose.msra.mxu0 0
  %230 = vmatprep.subr.bf16.mxu0 0
  %231 = vmatpush1.bf16.xpose.msra.mxu0 0
  %232 = vmatprep.subr.bf16.mxu0 0
  %233 = vmatpush1.bf16.xpose.msra.mxu0 0
  %234 = vmatprep.subr.bf16.mxu0 0
  %235 = vmatpush1.bf16.xpose.msra.mxu0 0
  %236 = vmatprep.subr.bf16.mxu0 0
  %237 = vmatpush1.bf16.xpose.msra.mxu0 0
  %238 = vmatprep.subr.bf16.mxu0 0
  %239 = vmatpush1.bf16.xpose.msra.mxu0 0
  %240 = vmatprep.subr.bf16.mxu0 0
  %241 = vmatpush1.bf16.xpose.msra.mxu0 0
  %242 = vmatprep.subr.bf16.mxu0 0
  %243 = vmatpush1.bf16.xpose.msra.mxu0 0
  %244 = vmatprep.subr.bf16.mxu0 0
  %245 = vmatpush1.bf16.xpose.msra.mxu0 0
  %246 = vmatprep.subr.bf16.mxu0 0
  %247 = vmatpush1.bf16.xpose.msra.mxu0 0
  %248 = vmatprep.mubr.bf16.mxu0 0
  %249 = vmatmul.mubr.bf16.gmra.mrb[0].mxu0 %v211
  %v250 = vpop.f32.mrb[0].mxu0
  %v251 = vadd.f32 0.0, %v250
  %v252 = vpop.f32.mrb[0].mxu0
  %v253 = vpop.f32.mrb[0].mxu0
  %v254 = vadd.f32 0.0, %v253
  %v255 = vpop.f32.mrb[0].mxu0
  %256 = vdwg.mxu0
  %257 = vrot.lane.b32.xlu0 %v154, 112
  %v258 = vpop.permute.xlu0 %257
  %259 = vrot.lane.b32.xlu0 %v154, 80
  %v260 = vpop.permute.xlu0 %259
  %v262 = vsel %vm158, %v258, 0
  %v265 = vsel %vm158, %v260, 0
  %267 = vmatprep.subr.bf16.mxu0 0
  %268 = vmatpush1.bf16.xpose.msra.mxu0 %v265
  %269 = vmatprep.subr.bf16.mxu0 0
  %270 = vmatpush1.bf16.xpose.msra.mxu0 0
  %271 = vmatprep.subr.bf16.mxu0 0
  %272 = vmatpush1.bf16.xpose.msra.mxu0 0
  %273 = vmatprep.subr.bf16.mxu0 0
  %274 = vmatpush1.bf16.xpose.msra.mxu0 0
  %275 = vmatprep.subr.bf16.mxu0 0
  %276 = vmatpush1.bf16.xpose.msra.mxu0 0
  %277 = vmatprep.subr.bf16.mxu0 0
  %278 = vmatpush1.bf16.xpose.msra.mxu0 0
  %279 = vmatprep.subr.bf16.mxu0 0
  %280 = vmatpush1.bf16.xpose.msra.mxu0 0
  %281 = vmatprep.subr.bf16.mxu0 0
  %282 = vmatpush1.bf16.xpose.msra.mxu0 0
  %283 = vmatprep.subr.bf16.mxu0 0
  %284 = vmatpush1.bf16.xpose.msra.mxu0 0
  %285 = vmatprep.subr.bf16.mxu0 0
  %286 = vmatpush1.bf16.xpose.msra.mxu0 0
  %287 = vmatprep.subr.bf16.mxu0 0
  %288 = vmatpush1.bf16.xpose.msra.mxu0 0
  %289 = vmatprep.subr.bf16.mxu0 0
  %290 = vmatpush1.bf16.xpose.msra.mxu0 0
  %291 = vmatprep.subr.bf16.mxu0 0
  %292 = vmatpush1.bf16.xpose.msra.mxu0 0
  %293 = vmatprep.subr.bf16.mxu0 0
  %294 = vmatpush1.bf16.xpose.msra.mxu0 0
  %295 = vmatprep.subr.bf16.mxu0 0
  %296 = vmatpush1.bf16.xpose.msra.mxu0 0
  %297 = vmatprep.subr.bf16.mxu0 0
  %298 = vmatpush1.bf16.xpose.msra.mxu0 0
  %299 = vmatprep.mubr.bf16.mxu0 0
  %300 = vmatmul.mubr.bf16.gmra.mrb[0].mxu0 %v262
  %v301 = vpop.f32.mrb[0].mxu0
  %v302 = vadd.f32 0.0, %v301
  %v303 = vpop.f32.mrb[0].mxu0
  %v304 = vpop.f32.mrb[0].mxu0
  %v305 = vadd.f32 0.0, %v304
  %v306 = vpop.f32.mrb[0].mxu0
  %307 = vdwg.mxu0
  %308 = vrot.lane.b32.xlu0 %v154, 104
  %v309 = vpop.permute.xlu0 %308
  %310 = vrot.lane.b32.xlu0 %v154, 72
  %v311 = vpop.permute.xlu0 %310
  %v313 = vsel %vm158, %v309, 0
  %v316 = vsel %vm158, %v311, 0
  %318 = vmatprep.subr.bf16.mxu0 0
  %319 = vmatpush1.bf16.xpose.msra.mxu0 %v316
  %320 = vmatprep.subr.bf16.mxu0 0
  %321 = vmatpush1.bf16.xpose.msra.mxu0 0
  %322 = vmatprep.subr.bf16.mxu0 0
  %323 = vmatpush1.bf16.xpose.msra.mxu0 0
  %324 = vmatprep.subr.bf16.mxu0 0
  %325 = vmatpush1.bf16.xpose.msra.mxu0 0
  %326 = vmatprep.subr.bf16.mxu0 0
  %327 = vmatpush1.bf16.xpose.msra.mxu0 0
  %328 = vmatprep.subr.bf16.mxu0 0
  %329 = vmatpush1.bf16.xpose.msra.mxu0 0
  %330 = vmatprep.subr.bf16.mxu0 0
  %331 = vmatpush1.bf16.xpose.msra.mxu0 0
  %332 = vmatprep.subr.bf16.mxu0 0
  %333 = vmatpush1.bf16.xpose.msra.mxu0 0
  %334 = vmatprep.subr.bf16.mxu0 0
  %335 = vmatpush1.bf16.xpose.msra.mxu0 0
  %336 = vmatprep.subr.bf16.mxu0 0
  %337 = vmatpush1.bf16.xpose.msra.mxu0 0
  %338 = vmatprep.subr.bf16.mxu0 0
  %339 = vmatpush1.bf16.xpose.msra.mxu0 0
  %340 = vmatprep.subr.bf16.mxu0 0
  %341 = vmatpush1.bf16.xpose.msra.mxu0 0
  %342 = vmatprep.subr.bf16.mxu0 0
  %343 = vmatpush1.bf16.xpose.msra.mxu0 0
  %344 = vmatprep.subr.bf16.mxu0 0
  %345 = vmatpush1.bf16.xpose.msra.mxu0 0
  %346 = vmatprep.subr.bf16.mxu0 0
  %347 = vmatpush1.bf16.xpose.msra.mxu0 0
  %348 = vmatprep.subr.bf16.mxu0 0
  %349 = vmatpush1.bf16.xpose.msra.mxu0 0
  %350 = vmatprep.mubr.bf16.mxu0 0
  %351 = vmatmul.mubr.bf16.gmra.mrb[0].mxu0 %v313
  %v352 = vpop.f32.mrb[0].mxu0
  %v353 = vadd.f32 0.0, %v352
  %v354 = vpop.f32.mrb[0].mxu0
  %v355 = vpop.f32.mrb[0].mxu0
  %v356 = vadd.f32 0.0, %v355
  %v357 = vpop.f32.mrb[0].mxu0
  %358 = vdwg.mxu0
  %v359 = vmul.f32 %v200, 0.35355338
  %v360 = vmul.f32 %v203, 0.35355338
  %v361 = vmul.f32 %v251, 0.35355338
  %v362 = vmul.f32 %v254, 0.35355338
  %v363 = vmul.f32 %v302, 0.35355338
  %v364 = vmul.f32 %v305, 0.35355338
  %v365 = vmul.f32 %v353, 0.35355338
  %v366 = vmul.f32 %v356, 0.35355338
  %v367 = vadd.f32 %v359, %v21
  %v368 = vadd.f32 %v360, %v22
  %v369 = vadd.f32 %v361, %v23
  %v370 = vadd.f32 %v362, %v24
  %v371 = vadd.f32 %v363, %v25
  %v372 = vadd.f32 %v364, %v26
  %v373 = vadd.f32 %v365, %v27
  %v374 = vadd.f32 %v366, %v28
  %vm375 = vcmask 130048
  %v376 = vsel %vm375, %v367, -inf
  %377 = vmax.xlane.f32.xlu0 %v376
  %v378 = vpop.xlane.xlu0 %377
  %v379 = vsel %vm375, %v368, -inf
  %380 = vmax.xlane.f32.xlu0 %v379
  %v381 = vpop.xlane.xlu0 %380
  %v382 = vsel %vm375, %v369, -inf
  %383 = vmax.xlane.f32.xlu0 %v382
  %v384 = vpop.xlane.xlu0 %383
  %v385 = vsel %vm375, %v370, -inf
  %386 = vmax.xlane.f32.xlu0 %v385
  %v387 = vpop.xlane.xlu0 %386
  %v388 = vsel %vm375, %v371, -inf
  %389 = vmax.xlane.f32.xlu0 %v388
  %v390 = vpop.xlane.xlu0 %389
  %v391 = vsel %vm375, %v372, -inf
  %392 = vmax.xlane.f32.xlu0 %v391
  %v393 = vpop.xlane.xlu0 %392
  %v394 = vsel %vm375, %v373, -inf
  %395 = vmax.xlane.f32.xlu0 %v394
  %v396 = vpop.xlane.xlu0 %395
  %v397 = vsel %vm375, %v374, -inf
  %398 = vmax.xlane.f32.xlu0 %v397
  %v399 = vpop.xlane.xlu0 %398
  %v400 = vsub.f32 %v367, %v378
  %v401 = vsub.f32 %v368, %v381
  %v402 = vsub.f32 %v369, %v384
  %v403 = vsub.f32 %v370, %v387
  %v404 = vsub.f32 %v371, %v390
  %v405 = vsub.f32 %v372, %v393
  %v406 = vsub.f32 %v373, %v396
  %v407 = vsub.f32 %v374, %v399
  %v408 = vmul.f32 %v400, 1.442695
  %v409 = vpow.pop %v408
  %v410 = vmul.f32 %v401, 1.442695
  %v411 = vpow.pop %v410
  %v412 = vmul.f32 %v402, 1.442695
  %v413 = vpow.pop %v412
  %v414 = vmul.f32 %v403, 1.442695
  %v415 = vpow.pop %v414
  %v416 = vmul.f32 %v404, 1.442695
  %v417 = vpow.pop %v416
  %v418 = vmul.f32 %v405, 1.442695
  %v419 = vpow.pop %v418
  %v420 = vmul.f32 %v406, 1.442695
  %v421 = vpow.pop %v420
  %v422 = vmul.f32 %v407, 1.442695
  %v423 = vpow.pop %v422
  %v424 = vsel %vm375, %v409, 0.0
  %425 = vadd.xlane.f32.xlu0 %v424
  %v426 = vpop.xlane.xlu0 %425
  %v427 = vsel %vm375, %v411, 0.0
  %428 = vadd.xlane.f32.xlu0 %v427
  %v429 = vpop.xlane.xlu0 %428
  %v430 = vsel %vm375, %v413, 0.0
  %431 = vadd.xlane.f32.xlu0 %v430
  %v432 = vpop.xlane.xlu0 %431
  %v433 = vsel %vm375, %v415, 0.0
  %434 = vadd.xlane.f32.xlu0 %v433
  %v435 = vpop.xlane.xlu0 %434
  %v436 = vsel %vm375, %v417, 0.0
  %437 = vadd.xlane.f32.xlu0 %v436
  %v438 = vpop.xlane.xlu0 %437
  %v439 = vsel %vm375, %v419, 0.0
  %440 = vadd.xlane.f32.xlu0 %v439
  %v441 = vpop.xlane.xlu0 %440
  %v442 = vsel %vm375, %v421, 0.0
  %443 = vadd.xlane.f32.xlu0 %v442
  %v444 = vpop.xlane.xlu0 %443
  %v445 = vsel %vm375, %v423, 0.0
  %446 = vadd.xlane.f32.xlu0 %v445
  %v447 = vpop.xlane.xlu0 %446
  %v448 = vrcp.pop %v426
  %v449 = vrcp.pop %v429
  %v450 = vrcp.pop %v432
  %v451 = vrcp.pop %v435
  %v452 = vrcp.pop %v438
  %v453 = vrcp.pop %v441
  %v454 = vrcp.pop %v444
  %v455 = vrcp.pop %v447
  %v456 = vmul.f32 %v409, %v448
  %v457 = vmul.f32 %v411, %v449
  %v458 = vmul.f32 %v413, %v450
  %v459 = vmul.f32 %v415, %v451
  %v460 = vmul.f32 %v417, %v452
  %v461 = vmul.f32 %v419, %v453
  %v462 = vmul.f32 %v421, %v454
  %v463 = vmul.f32 %v423, %v455
  %v464 = vpack.c.bf16 %v457, %v456
  %v465 = vpack.c.bf16 %v459, %v458
  %v466 = vpack.c.bf16 %v461, %v460
  %v467 = vpack.c.bf16 %v463, %v462
  %468 = vrot.lane.b32.xlu0 %v154, 64
  %v469 = vpop.permute.xlu0 %468
  %v472 = vsel %vm375, %v464, 0
  %474 = vmatprep.subr.bf16.mxu0 0
  %475 = vmatpush1.bf16.msra.mxu0 %v469
  %476 = vmatprep.subr.bf16.mxu0 0
  %477 = vmatpush1.bf16.msra.mxu0 0
  %478 = vmatprep.subr.bf16.mxu0 0
  %479 = vmatpush1.bf16.msra.mxu0 0
  %480 = vmatprep.subr.bf16.mxu0 0
  %481 = vmatpush1.bf16.msra.mxu0 0
  %482 = vmatprep.subr.bf16.mxu0 0
  %483 = vmatpush1.bf16.msra.mxu0 0
  %484 = vmatprep.subr.bf16.mxu0 0
  %485 = vmatpush1.bf16.msra.mxu0 0
  %486 = vmatprep.subr.bf16.mxu0 0
  %487 = vmatpush1.bf16.msra.mxu0 0
  %488 = vmatprep.subr.bf16.mxu0 0
  %489 = vmatpush1.bf16.msra.mxu0 0
  %490 = vmatprep.subr.bf16.mxu0 0
  %491 = vmatpush1.bf16.msra.mxu0 0
  %492 = vmatprep.subr.bf16.mxu0 0
  %493 = vmatpush1.bf16.msra.mxu0 0
  %494 = vmatprep.subr.bf16.mxu0 0
  %495 = vmatpush1.bf16.msra.mxu0 0
  %496 = vmatprep.subr.bf16.mxu0 0
  %497 = vmatpush1.bf16.msra.mxu0 0
  %498 = vmatprep.subr.bf16.mxu0 0
  %499 = vmatpush1.bf16.msra.mxu0 0
  %500 = vmatprep.subr.bf16.mxu0 0
  %501 = vmatpush1.bf16.msra.mxu0 0
  %502 = vmatprep.subr.bf16.mxu0 0
  %503 = vmatpush1.bf16.msra.mxu0 0
  %504 = vmatprep.subr.bf16.mxu0 0
  %505 = vmatpush1.bf16.msra.mxu0 0
  %506 = vmatprep.mubr.bf16.mxu0 0
  %507 = vmatmul.mubr.bf16.gmra.mrb[0].mxu0 %v472
  %v508 = vpop.f32.mrb[0].mxu0
  %v509 = vadd.f32 0.0, %v508
  %v510 = vpop.f32.mrb[0].mxu0
  %v511 = vpop.f32.mrb[0].mxu0
  %v512 = vadd.f32 0.0, %v511
  %v513 = vpop.f32.mrb[0].mxu0
  %514 = vdwg.mxu0
  %515 = vrot.lane.b32.xlu0 %v154, 56
  %v516 = vpop.permute.xlu0 %515
  %v519 = vsel %vm375, %v465, 0
  %521 = vmatprep.subr.bf16.mxu0 0
  %522 = vmatpush1.bf16.msra.mxu0 %v516
  %523 = vmatprep.subr.bf16.mxu0 0
  %524 = vmatpush1.bf16.msra.mxu0 0
  %525 = vmatprep.subr.bf16.mxu0 0
  %526 = vmatpush1.bf16.msra.mxu0 0
  %527 = vmatprep.subr.bf16.mxu0 0
  %528 = vmatpush1.bf16.msra.mxu0 0
  %529 = vmatprep.subr.bf16.mxu0 0
  %530 = vmatpush1.bf16.msra.mxu0 0
  %531 = vmatprep.subr.bf16.mxu0 0
  %532 = vmatpush1.bf16.msra.mxu0 0
  %533 = vmatprep.subr.bf16.mxu0 0
  %534 = vmatpush1.bf16.msra.mxu0 0
  %535 = vmatprep.subr.bf16.mxu0 0
  %536 = vmatpush1.bf16.msra.mxu0 0
  %537 = vmatprep.subr.bf16.mxu0 0
  %538 = vmatpush1.bf16.msra.mxu0 0
  %539 = vmatprep.subr.bf16.mxu0 0
  %540 = vmatpush1.bf16.msra.mxu0 0
  %541 = vmatprep.subr.bf16.mxu0 0
  %542 = vmatpush1.bf16.msra.mxu0 0
  %543 = vmatprep.subr.bf16.mxu0 0
  %544 = vmatpush1.bf16.msra.mxu0 0
  %545 = vmatprep.subr.bf16.mxu0 0
  %546 = vmatpush1.bf16.msra.mxu0 0
  %547 = vmatprep.subr.bf16.mxu0 0
  %548 = vmatpush1.bf16.msra.mxu0 0
  %549 = vmatprep.subr.bf16.mxu0 0
  %550 = vmatpush1.bf16.msra.mxu0 0
  %551 = vmatprep.subr.bf16.mxu0 0
  %552 = vmatpush1.bf16.msra.mxu0 0
  %553 = vmatprep.mubr.bf16.mxu0 0
  %554 = vmatmul.mubr.bf16.gmra.mrb[0].mxu0 %v519
  %v555 = vpop.f32.mrb[0].mxu0
  %v556 = vadd.f32 0.0, %v555
  %v557 = vpop.f32.mrb[0].mxu0
  %v558 = vpop.f32.mrb[0].mxu0
  %v559 = vadd.f32 0.0, %v558
  %v560 = vpop.f32.mrb[0].mxu0
  %561 = vdwg.mxu0
  %562 = vrot.lane.b32.xlu0 %v154, 48
  %v563 = vpop.permute.xlu0 %562
  %v566 = vsel %vm375, %v466, 0
  %568 = vmatprep.subr.bf16.mxu0 0
  %569 = vmatpush1.bf16.msra.mxu0 %v563
  %570 = vmatprep.subr.bf16.mxu0 0
  %571 = vmatpush1.bf16.msra.mxu0 0
  %572 = vmatprep.subr.bf16.mxu0 0
  %573 = vmatpush1.bf16.msra.mxu0 0
  %574 = vmatprep.subr.bf16.mxu0 0
  %575 = vmatpush1.bf16.msra.mxu0 0
  %576 = vmatprep.subr.bf16.mxu0 0
  %577 = vmatpush1.bf16.msra.mxu0 0
  %578 = vmatprep.subr.bf16.mxu0 0
  %579 = vmatpush1.bf16.msra.mxu0 0
  %580 = vmatprep.subr.bf16.mxu0 0
  %581 = vmatpush1.bf16.msra.mxu0 0
  %582 = vmatprep.subr.bf16.mxu0 0
  %583 = vmatpush1.bf16.msra.mxu0 0
  %584 = vmatprep.subr.bf16.mxu0 0
  %585 = vmatpush1.bf16.msra.mxu0 0
  %586 = vmatprep.subr.bf16.mxu0 0
  %587 = vmatpush1.bf16.msra.mxu0 0
  %588 = vmatprep.subr.bf16.mxu0 0
  %589 = vmatpush1.bf16.msra.mxu0 0
  %590 = vmatprep.subr.bf16.mxu0 0
  %591 = vmatpush1.bf16.msra.mxu0 0
  %592 = vmatprep.subr.bf16.mxu0 0
  %593 = vmatpush1.bf16.msra.mxu0 0
  %594 = vmatprep.subr.bf16.mxu0 0
  %595 = vmatpush1.bf16.msra.mxu0 0
  %596 = vmatprep.subr.bf16.mxu0 0
  %597 = vmatpush1.bf16.msra.mxu0 0
  %598 = vmatprep.subr.bf16.mxu0 0
  %599 = vmatpush1.bf16.msra.mxu0 0
  %600 = vmatprep.mubr.bf16.mxu0 0
  %601 = vmatmul.mubr.bf16.gmra.mrb[0].mxu0 %v566
  %v602 = vpop.f32.mrb[0].mxu0
  %v603 = vadd.f32 0.0, %v602
  %v604 = vpop.f32.mrb[0].mxu0
  %v605 = vpop.f32.mrb[0].mxu0
  %v606 = vadd.f32 0.0, %v605
  %v607 = vpop.f32.mrb[0].mxu0
  %608 = vdwg.mxu0
  %609 = vrot.lane.b32.xlu0 %v154, 40
  %v610 = vpop.permute.xlu0 %609
  %v613 = vsel %vm375, %v467, 0
  %615 = vmatprep.subr.bf16.mxu0 0
  %616 = vmatpush1.bf16.msra.mxu0 %v610
  %617 = vmatprep.subr.bf16.mxu0 0
  %618 = vmatpush1.bf16.msra.mxu0 0
  %619 = vmatprep.subr.bf16.mxu0 0
  %620 = vmatpush1.bf16.msra.mxu0 0
  %621 = vmatprep.subr.bf16.mxu0 0
  %622 = vmatpush1.bf16.msra.mxu0 0
  %623 = vmatprep.subr.bf16.mxu0 0
  %624 = vmatpush1.bf16.msra.mxu0 0
  %625 = vmatprep.subr.bf16.mxu0 0
  %626 = vmatpush1.bf16.msra.mxu0 0
  %627 = vmatprep.subr.bf16.mxu0 0
  %628 = vmatpush1.bf16.msra.mxu0 0
  %629 = vmatprep.subr.bf16.mxu0 0
  %630 = vmatpush1.bf16.msra.mxu0 0
  %631 = vmatprep.subr.bf16.mxu0 0
  %632 = vmatpush1.bf16.msra.mxu0 0
  %633 = vmatprep.subr.bf16.mxu0 0
  %634 = vmatpush1.bf16.msra.mxu0 0
  %635 = vmatprep.subr.bf16.mxu0 0
  %636 = vmatpush1.bf16.msra.mxu0 0
  %637 = vmatprep.subr.bf16.mxu0 0
  %638 = vmatpush1.bf16.msra.mxu0 0
  %639 = vmatprep.subr.bf16.mxu0 0
  %640 = vmatpush1.bf16.msra.mxu0 0
  %641 = vmatprep.subr.bf16.mxu0 0
  %642 = vmatpush1.bf16.msra.mxu0 0
  %643 = vmatprep.subr.bf16.mxu0 0
  %644 = vmatpush1.bf16.msra.mxu0 0
  %645 = vmatprep.subr.bf16.mxu0 0
  %646 = vmatpush1.bf16.msra.mxu0 0
  %647 = vmatprep.mubr.bf16.mxu0 0
  %648 = vmatmul.mubr.bf16.gmra.mrb[0].mxu0 %v613
  %v649 = vpop.f32.mrb[0].mxu0
  %v650 = vadd.f32 0.0, %v649
  %v651 = vpop.f32.mrb[0].mxu0
  %v652 = vpop.f32.mrb[0].mxu0
  %v653 = vadd.f32 0.0, %v652
  %v654 = vpop.f32.mrb[0].mxu0
  %655 = vdwg.mxu0
  %658 = vrot.lane.b32.xlu0 %v556, 8
  %v659 = vpop.permute.xlu0 %658
  %660 = vrot.lane.b32.xlu0 %v559, 8
  %v661 = vpop.permute.xlu0 %660
  %666 = vrot.lane.b32.xlu0 %v603, 16
  %v667 = vpop.permute.xlu0 %666
  %668 = vrot.lane.b32.xlu0 %v606, 16
  %v669 = vpop.permute.xlu0 %668
  %674 = vrot.lane.b32.xlu0 %v650, 24
  %v675 = vpop.permute.xlu0 %674
  %676 = vrot.lane.b32.xlu0 %v653, 24
  %v677 = vpop.permute.xlu0 %676
  %v680 = vsel %vm158, %v509, %v659
  %v681 = vsel %vm158, %v512, %v661
  %v682 = vsel %vm375, %v680, %v667
  %v683 = vsel %vm375, %v681, %v669
  %vm684 = vcmask 195584
  %v685 = vsel %vm684, %v682, %v675
  %v686 = vsel %vm684, %v683, %v677
  %v687 = vpack.c.bf16 %v686, %v685
  %v692 = vunpack.c.l.b16 %v75
  %v693 = vunpack.c.l.b16 %v76
  %v694 = vunpack.c.l.b16 %v77
  %v695 = vunpack.c.l.b16 %v78
  %v696 = vpack.c.b16 %v693, %v692
  %v697 = vpack.c.b16 %v695, %v694
  %v701 = vsel %vm31, %v687, 0
  %703 = vmatprep.subr.bf16.mxu0 0
  %704 = vmatpush1.bf16.msra.mxu0 %v696
  %705 = vmatprep.subr.bf16.mxu0 0
  %706 = vmatpush1.bf16.msra.mxu0 %v697
  %707 = vmatprep.subr.bf16.mxu0 0
  %708 = vmatpush1.bf16.msra.mxu0 0
  %709 = vmatprep.subr.bf16.mxu0 0
  %710 = vmatpush1.bf16.msra.mxu0 0
  %711 = vmatprep.subr.bf16.mxu0 0
  %712 = vmatpush1.bf16.msra.mxu0 0
  %713 = vmatprep.subr.bf16.mxu0 0
  %714 = vmatpush1.bf16.msra.mxu0 0
  %715 = vmatprep.subr.bf16.mxu0 0
  %716 = vmatpush1.bf16.msra.mxu0 0
  %717 = vmatprep.subr.bf16.mxu0 0
  %718 = vmatpush1.bf16.msra.mxu0 0
  %719 = vmatprep.subr.bf16.mxu0 0
  %720 = vmatpush1.bf16.msra.mxu0 0
  %721 = vmatprep.subr.bf16.mxu0 0
  %722 = vmatpush1.bf16.msra.mxu0 0
  %723 = vmatprep.subr.bf16.mxu0 0
  %724 = vmatpush1.bf16.msra.mxu0 0
  %725 = vmatprep.subr.bf16.mxu0 0
  %726 = vmatpush1.bf16.msra.mxu0 0
  %727 = vmatprep.subr.bf16.mxu0 0
  %728 = vmatpush1.bf16.msra.mxu0 0
  %729 = vmatprep.subr.bf16.mxu0 0
  %730 = vmatpush1.bf16.msra.mxu0 0
  %731 = vmatprep.subr.bf16.mxu0 0
  %732 = vmatpush1.bf16.msra.mxu0 0
  %733 = vmatprep.subr.bf16.mxu0 0
  %734 = vmatpush1.bf16.msra.mxu0 0
  %735 = vmatprep.mubr.bf16.mxu0 0
  %736 = vmatmul.mubr.bf16.gmra.mrb[0].mxu0 %v701
  %v737 = vpop.f32.mrb[0].mxu0
  %v738 = vadd.f32 0.0, %v737
  %v739 = vpop.f32.mrb[0].mxu0
  %v740 = vpop.f32.mrb[0].mxu0
  %v741 = vadd.f32 0.0, %v740
  %v742 = vpop.f32.mrb[0].mxu0
  %743 = vdwg.mxu0
  %v744 = vlaneseq
  %v745 = vshrl.u32 %v744, 7
  %v746 = vsub.s32 3, %v745
  %v747 = vrot.slane %v18, %v746
  %v748 = vadd.f32 %v738, %v747
  %v749 = vadd.f32 %v741, %v747
  %v750 = vadd.f32 %v748, %v69
  %v751 = vadd.f32 %v749, %v70
  %v752 = vsel %vm31, %v750, 0.0
  %753 = vadd.xlane.f32.xlu0 %v752
  %v754 = vpop.xlane.xlu0 %753
  %v755 = vsel %vm31, %v751, 0.0
  %756 = vadd.xlane.f32.xlu0 %v755
  %v757 = vpop.xlane.xlu0 %756
  %v758 = vmul.f32 %v754, %v38
  %v759 = vmul.f32 %v757, %v38
  %v760 = vsub.f32 %v750, %v758
  %v761 = vsub.f32 %v751, %v759
  %v762 = vmul.f32 %v760, %v760
  %v763 = vmul.f32 %v761, %v761
  %v764 = vsel %vm31, %v762, 0.0
  %765 = vadd.xlane.f32.xlu0 %v764
  %v766 = vpop.xlane.xlu0 %765
  %v767 = vsel %vm31, %v763, 0.0
  %768 = vadd.xlane.f32.xlu0 %v767
  %v769 = vpop.xlane.xlu0 %768
  %v770 = vmul.f32 %v766, %v38
  %v771 = vmul.f32 %v769, %v38
  %v772 = vadd.f32 %v770, 1e-12
  %v773 = vadd.f32 %v771, 1e-12
  %v774 = vrsqrt.pop %v772
  %v775 = vrsqrt.pop %v773
  %v776 = vmul.f32 %v760, %v774
  %v777 = vmul.f32 %v761, %v775
  %v778 = vlaneseq
  %v779 = vshrl.u32 %v778, 7
  %v780 = vsub.s32 4, %v779
  %v781 = vrot.slane %v18, %v780
  %v782 = vmul.f32 %v776, %v781
  %v783 = vmul.f32 %v777, %v781
  %v784 = vlaneseq
  %v785 = vshrl.u32 %v784, 7
  %v786 = vsub.s32 5, %v785
  %v787 = vrot.slane %v18, %v786
  %v788 = vadd.f32 %v782, %v787
  %v789 = vadd.f32 %v783, %v787
  %v790 = vpack.c.bf16 %v789, %v788
  %v795 = vunpack.c.l.b16 %v79
  %v796 = vunpack.c.l.b16 %v80
  %v797 = vunpack.c.l.b16 %v81
  %v798 = vunpack.c.l.b16 %v82
  %v799 = vpack.c.b16 %v796, %v795
  %v800 = vpack.c.b16 %v798, %v797
  %v804 = vsel %vm31, %v790, 0
  %806 = vmatprep.subr.bf16.mxu0 0
  %807 = vmatpush1.bf16.msra.mxu0 %v799
  %808 = vmatprep.subr.bf16.mxu0 0
  %809 = vmatpush1.bf16.msra.mxu0 %v800
  %810 = vmatprep.subr.bf16.mxu0 0
  %811 = vmatpush1.bf16.msra.mxu0 0
  %812 = vmatprep.subr.bf16.mxu0 0
  %813 = vmatpush1.bf16.msra.mxu0 0
  %814 = vmatprep.subr.bf16.mxu0 0
  %815 = vmatpush1.bf16.msra.mxu0 0
  %816 = vmatprep.subr.bf16.mxu0 0
  %817 = vmatpush1.bf16.msra.mxu0 0
  %818 = vmatprep.subr.bf16.mxu0 0
  %819 = vmatpush1.bf16.msra.mxu0 0
  %820 = vmatprep.subr.bf16.mxu0 0
  %821 = vmatpush1.bf16.msra.mxu0 0
  %822 = vmatprep.subr.bf16.mxu0 0
  %823 = vmatpush1.bf16.msra.mxu0 0
  %824 = vmatprep.subr.bf16.mxu0 0
  %825 = vmatpush1.bf16.msra.mxu0 0
  %826 = vmatprep.subr.bf16.mxu0 0
  %827 = vmatpush1.bf16.msra.mxu0 0
  %828 = vmatprep.subr.bf16.mxu0 0
  %829 = vmatpush1.bf16.msra.mxu0 0
  %830 = vmatprep.subr.bf16.mxu0 0
  %831 = vmatpush1.bf16.msra.mxu0 0
  %832 = vmatprep.subr.bf16.mxu0 0
  %833 = vmatpush1.bf16.msra.mxu0 0
  %834 = vmatprep.subr.bf16.mxu0 0
  %835 = vmatpush1.bf16.msra.mxu0 0
  %836 = vmatprep.subr.bf16.mxu0 0
  %837 = vmatpush1.bf16.msra.mxu0 0
  %838 = vmatprep.mubr.bf16.mxu0 0
  %839 = vmatmul.mubr.bf16.gmra.mrb[0].mxu0 %v804
  %v840 = vpop.f32.mrb[0].mxu0
  %v841 = vadd.f32 0.0, %v840
  %v842 = vpop.f32.mrb[0].mxu0
  %v843 = vpop.f32.mrb[0].mxu0
  %v844 = vadd.f32 0.0, %v843
  %v845 = vpop.f32.mrb[0].mxu0
  %846 = vdwg.mxu0
  %v847 = vlaneseq
  %v848 = vshrl.u32 %v847, 7
  %v849 = vsub.s32 6, %v848
  %v850 = vrot.slane %v18, %v849
  %v851 = vadd.f32 %v841, %v850
  %v852 = vadd.f32 %v844, %v850
  %v853 = vmul.f32 %v851, %v851
  %v854 = vmul.f32 %v852, %v852
  %v855 = vmul.f32 %v851, %v853
  %v856 = vmul.f32 %v852, %v854
  %v857 = vmul.f32 %v855, 0.044715
  %v858 = vmul.f32 %v856, 0.044715
  %v859 = vadd.f32 %v851, %v857
  %v860 = vadd.f32 %v852, %v858
  %v861 = vmul.f32 %v859, 0.7978846
  %v862 = vmul.f32 %v860, 0.7978846
  %v863 = vtanh.pop %v861
  %v864 = vtanh.pop %v862
  %v865 = vadd.f32 %v863, 1.0
  %v866 = vadd.f32 %v864, 1.0
  %v867 = vmul.f32 %v865, 0.5
  %v868 = vmul.f32 %v866, 0.5
  %v869 = vmul.f32 %v851, %v867
  %v870 = vmul.f32 %v852, %v868
  %v871 = vpack.c.bf16 %v870, %v869
  %v880 = vunpack.c.l.b16 %v83
  %v881 = vunpack.c.l.b16 %v84
  %v882 = vunpack.c.l.b16 %v85
  %v883 = vunpack.c.l.b16 %v86
  %v884 = vunpack.c.l.b16 %v87
  %v885 = vunpack.c.l.b16 %v88
  %v886 = vunpack.c.l.b16 %v89
  %v887 = vunpack.c.l.b16 %v90
  %v888 = vpack.c.b16 %v881, %v880
  %v889 = vpack.c.b16 %v883, %v882
  %v890 = vpack.c.b16 %v885, %v884
  %v891 = vpack.c.b16 %v887, %v886
  %vm896 = vcmask 523264
  %v898 = vsel %vm896, %v871, 0
  %900 = vmatprep.subr.bf16.mxu0 0
  %901 = vmatpush1.bf16.msra.mxu0 %v888
  %902 = vmatprep.subr.bf16.mxu0 0
  %903 = vmatpush1.bf16.msra.mxu0 %v889
  %904 = vmatprep.subr.bf16.mxu0 0
  %905 = vmatpush1.bf16.msra.mxu0 %v890
  %906 = vmatprep.subr.bf16.mxu0 0
  %907 = vmatpush1.bf16.msra.mxu0 %v891
  %908 = vmatprep.subr.bf16.mxu0 0
  %909 = vmatpush1.bf16.msra.mxu0 0
  %910 = vmatprep.subr.bf16.mxu0 0
  %911 = vmatpush1.bf16.msra.mxu0 0
  %912 = vmatprep.subr.bf16.mxu0 0
  %913 = vmatpush1.bf16.msra.mxu0 0
  %914 = vmatprep.subr.bf16.mxu0 0
  %915 = vmatpush1.bf16.msra.mxu0 0
  %916 = vmatprep.subr.bf16.mxu0 0
  %917 = vmatpush1.bf16.msra.mxu0 0
  %918 = vmatprep.subr.bf16.mxu0 0
  %919 = vmatpush1.bf16.msra.mxu0 0
  %920 = vmatprep.subr.bf16.mxu0 0
  %921 = vmatpush1.bf16.msra.mxu0 0
  %922 = vmatprep.subr.bf16.mxu0 0
  %923 = vmatpush1.bf16.msra.mxu0 0
  %924 = vmatprep.subr.bf16.mxu0 0
  %925 = vmatpush1.bf16.msra.mxu0 0
  %926 = vmatprep.subr.bf16.mxu0 0
  %927 = vmatpush1.bf16.msra.mxu0 0
  %928 = vmatprep.subr.bf16.mxu0 0
  %929 = vmatpush1.bf16.msra.mxu0 0
  %930 = vmatprep.subr.bf16.mxu0 0
  %931 = vmatpush1.bf16.msra.mxu0 0
  %932 = vmatprep.mubr.bf16.mxu0 0
  %933 = vmatmul.mubr.bf16.gmra.mrb[0].mxu0 %v898
  %v934 = vpop.f32.mrb[0].mxu0
  %v935 = vadd.f32 0.0, %v934
  %v936 = vpop.f32.mrb[0].mxu0
  %v937 = vpop.f32.mrb[0].mxu0
  %v938 = vadd.f32 0.0, %v937
  %v939 = vpop.f32.mrb[0].mxu0
  %940 = vdwg.mxu0
  %v941 = vlaneseq
  %v942 = vshrl.u32 %v941, 7
  %v943 = vsub.s32 7, %v942
  %v944 = vrot.slane %v18, %v943
  %v945 = vadd.f32 %v935, %v944
  %v946 = vadd.f32 %v938, %v944
  %v947 = vadd.f32 %v945, %v788
  %v948 = vadd.f32 %v946, %v789
  %v949 = vsel %vm31, %v947, 0.0
  %950 = vadd.xlane.f32.xlu0 %v949
  %v951 = vpop.xlane.xlu0 %950
  %v952 = vsel %vm31, %v948, 0.0
  %953 = vadd.xlane.f32.xlu0 %v952
  %v954 = vpop.xlane.xlu0 %953
  %v955 = vmul.f32 %v951, %v38
  %v956 = vmul.f32 %v954, %v38
  %v957 = vsub.f32 %v947, %v955
  %v958 = vsub.f32 %v948, %v956
  %v959 = vmul.f32 %v957, %v957
  %v960 = vmul.f32 %v958, %v958
  %v961 = vsel %vm31, %v959, 0.0
  %962 = vadd.xlane.f32.xlu0 %v961
  %v963 = vpop.xlane.xlu0 %962
  %v964 = vsel %vm31, %v960, 0.0
  %965 = vadd.xlane.f32.xlu0 %v964
  %v966 = vpop.xlane.xlu0 %965
  %v967 = vmul.f32 %v963, %v38
  %v968 = vmul.f32 %v966, %v38
  %v969 = vadd.f32 %v967, 1e-12
  %v970 = vadd.f32 %v968, 1e-12
  %v971 = vrsqrt.pop %v969
  %v972 = vrsqrt.pop %v970
  %v973 = vmul.f32 %v957, %v971
  %v974 = vmul.f32 %v958, %v972
  %v975 = vlaneseq
  %v976 = vshrl.u32 %v975, 7
  %v977 = vsub.s32 0, %v976
  %v978 = vrot.slane %v19, %v977
  %v979 = vmul.f32 %v973, %v978
  %v980 = vmul.f32 %v974, %v978
  %v981 = vlaneseq
  %v982 = vshrl.u32 %v981, 7
  %v983 = vsub.s32 1, %v982
  %v984 = vrot.slane %v19, %v983
  %v985 = vadd.f32 %v979, %v984
  %v986 = vadd.f32 %v980, %v984
  %v987 = vld [vmem:[%s2 + $0x50] sm:$0xf]
  %v988 = vld [vmem:[%s2 + $0x54] sm:$0xf]
  %v989 = vld [vmem:[%s2 + $0x58] sm:$0xf]
  %v990 = vld [vmem:[%s2 + $0x5c] sm:$0xf]
  %v991 = vld [vmem:[%s2 + $0x60] sm:$0xf]
  %v992 = vld [vmem:[%s2 + $0x64] sm:$0xf]
  %v993 = vld [vmem:[%s2 + $0x68] sm:$0xf]
  %v994 = vld [vmem:[%s2 + $0x6c] sm:$0xf]
  %v995 = vld [vmem:[%s2 + $0x70] sm:$0xf]
  %v996 = vld [vmem:[%s2 + $0x74] sm:$0xf]
  %v997 = vld [vmem:[%s2 + $0x78] sm:$0xf]
  %v998 = vld [vmem:[%s2 + $0x7c] sm:$0xf]
  %v999 = vld [vmem:[%s2 + $0x80] sm:$0xf]
  %v1000 = vld [vmem:[%s2 + $0x84] sm:$0xf]
  %v1001 = vld [vmem:[%s2 + $0x88] sm:$0xf]
  %v1002 = vld [vmem:[%s2 + $0x8c] sm:$0xf]
  %v1003 = vld [vmem:[%s2 + $0x90] sm:$0xf]
  %v1004 = vld [vmem:[%s2 + $0x94] sm:$0xf]
  %v1005 = vld [vmem:[%s2 + $0x98] sm:$0xf]
  %v1006 = vld [vmem:[%s2 + $0x9c] sm:$0xf]
  %v1007 = vpack.c.bf16 %v986, %v985
  %v1012 = vunpack.c.l.b16 %v987
  %v1013 = vunpack.c.l.b16 %v988
  %v1014 = vunpack.c.l.b16 %v989
  %v1015 = vunpack.c.l.b16 %v990
  %v1016 = vpack.c.b16 %v1013, %v1012
  %v1017 = vpack.c.b16 %v1015, %v1014
  %v1021 = vsel %vm31, %v1007, 0
  %1023 = vmatprep.subr.bf16.mxu0 0
  %1024 = vmatpush1.bf16.msra.mxu0 %v1016
  %1025 = vmatprep.subr.bf16.mxu0 0
  %1026 = vmatpush1.bf16.msra.mxu0 %v1017
  %1027 = vmatprep.subr.bf16.mxu0 0
  %1028 = vmatpush1.bf16.msra.mxu0 0
  %1029 = vmatprep.subr.bf16.mxu0 0
  %1030 = vmatpush1.bf16.msra.mxu0 0
  %1031 = vmatprep.subr.bf16.mxu0 0
  %1032 = vmatpush1.bf16.msra.mxu0 0
  %1033 = vmatprep.subr.bf16.mxu0 0
  %1034 = vmatpush1.bf16.msra.mxu0 0
  %1035 = vmatprep.subr.bf16.mxu0 0
  %1036 = vmatpush1.bf16.msra.mxu0 0
  %1037 = vmatprep.subr.bf16.mxu0 0
  %1038 = vmatpush1.bf16.msra.mxu0 0
  %1039 = vmatprep.subr.bf16.mxu0 0
  %1040 = vmatpush1.bf16.msra.mxu0 0
  %1041 = vmatprep.subr.bf16.mxu0 0
  %1042 = vmatpush1.bf16.msra.mxu0 0
  %1043 = vmatprep.subr.bf16.mxu0 0
  %1044 = vmatpush1.bf16.msra.mxu0 0
  %1045 = vmatprep.subr.bf16.mxu0 0
  %1046 = vmatpush1.bf16.msra.mxu0 0
  %1047 = vmatprep.subr.bf16.mxu0 0
  %1048 = vmatpush1.bf16.msra.mxu0 0
  %1049 = vmatprep.subr.bf16.mxu0 0
  %1050 = vmatpush1.bf16.msra.mxu0 0
  %1051 = vmatprep.subr.bf16.mxu0 0
  %1052 = vmatpush1.bf16.msra.mxu0 0
  %1053 = vmatprep.subr.bf16.mxu0 0
  %1054 = vmatpush1.bf16.msra.mxu0 0
  %1055 = vmatprep.mubr.bf16.mxu0 0
  %1056 = vmatmul.mubr.bf16.gmra.mrb[0].mxu0 %v1021
  %v1057 = vpop.f32.mrb[0].mxu0
  %v1058 = vadd.f32 0.0, %v1057
  %v1059 = vpop.f32.mrb[0].mxu0
  %v1060 = vpop.f32.mrb[0].mxu0
  %v1061 = vadd.f32 0.0, %v1060
  %v1062 = vpop.f32.mrb[0].mxu0
  %1063 = vdwg.mxu0
  %v1064 = vlaneseq
  %v1065 = vshrl.u32 %v1064, 7
  %v1066 = vsub.s32 2, %v1065
  %v1067 = vrot.slane %v19, %v1066
  %v1068 = vadd.f32 %v1058, %v1067
  %v1069 = vadd.f32 %v1061, %v1067
  %v1070 = vpack.c.bf16 %v1069, %v1068
  %1072 = vrot.lane.b32.xlu0 %v1070, 96
  %v1073 = vpop.permute.xlu0 %1072
  %v1075 = vsel %vm158, %v1070, 0
  %v1078 = vsel %vm158, %v1073, 0
  %1080 = vmatprep.subr.bf16.mxu0 0
  %1081 = vmatpush1.bf16.xpose.msra.mxu0 %v1078
  %1082 = vmatprep.subr.bf16.mxu0 0
  %1083 = vmatpush1.bf16.xpose.msra.mxu0 0
  %1084 = vmatprep.subr.bf16.mxu0 0
  %1085 = vmatpush1.bf16.xpose.msra.mxu0 0
  %1086 = vmatprep.subr.bf16.mxu0 0
  %1087 = vmatpush1.bf16.xpose.msra.mxu0 0
  %1088 = vmatprep.subr.bf16.mxu0 0
  %1089 = vmatpush1.bf16.xpose.msra.mxu0 0
  %1090 = vmatprep.subr.bf16.mxu0 0
  %1091 = vmatpush1.bf16.xpose.msra.mxu0 0
  %1092 = vmatprep.subr.bf16.mxu0 0
  %1093 = vmatpush1.bf16.xpose.msra.mxu0 0
  %1094 = vmatprep.subr.bf16.mxu0 0
  %1095 = vmatpush1.bf16.xpose.msra.mxu0 0
  %1096 = vmatprep.subr.bf16.mxu0 0
  %1097 = vmatpush1.bf16.xpose.msra.mxu0 0
  %1098 = vmatprep.subr.bf16.mxu0 0
  %1099 = vmatpush1.bf16.xpose.msra.mxu0 0
  %1100 = vmatprep.subr.bf16.mxu0 0
  %1101 = vmatpush1.bf16.xpose.msra.mxu0 0
  %1102 = vmatprep.subr.bf16.mxu0 0
  %1103 = vmatpush1.bf16.xpose.msra.mxu0 0
  %1104 = vmatprep.subr.bf16.mxu0 0
  %1105 = vmatpush1.bf16.xpose.msra.mxu0 0
  %1106 = vmatprep.subr.bf16.mxu0 0
  %1107 = vmatpush1.bf16.xpose.msra.mxu0 0
  %1108 = vmatprep.subr.bf16.mxu0 0
  %1109 = vmatpush1.bf16.xpose.msra.mxu0 0
  %1110 = vmatprep.subr.bf16.mxu0 0
  %1111 = vmatpush1.bf16.xpose.msra.mxu0 0
  %1112 = vmatprep.mubr.bf16.mxu0 0
  %1113 = vmatmul.mubr.bf16.gmra.mrb[0].mxu0 %v1075
  %v1114 = vpop.f32.mrb[0].mxu0
  %v1115 = vadd.f32 0.0, %v1114
  %v1116 = vpop.f32.mrb[0].mxu0
  %v1117 = vpop.f32.mrb[0].mxu0
  %v1118 = vadd.f32 0.0, %v1117
  %v1119 = vpop.f32.mrb[0].mxu0
  %1120 = vdwg.mxu0
  %1121 = vrot.lane.b32.xlu0 %v1070, 120
  %v1122 = vpop.permute.xlu0 %1121
  %1123 = vrot.lane.b32.xlu0 %v1070, 88
  %v1124 = vpop.permute.xlu0 %1123
  %v1126 = vsel %vm158, %v1122, 0
  %v1129 = vsel %vm158, %v1124, 0
  %1131 = vmatprep.subr.bf16.mxu0 0
  %1132 = vmatpush1.bf16.xpose.msra.mxu0 %v1129
  %1133 = vmatprep.subr.bf16.mxu0 0
  %1134 = vmatpush1.bf16.xpose.msra.mxu0 0
  %1135 = vmatprep.subr.bf16.mxu0 0
  %1136 = vmatpush1.bf16.xpose.msra.mxu0 0
  %1137 = vmatprep.subr.bf16.mxu0 0
  %1138 = vmatpush1.bf16.xpose.msra.mxu0 0
  %1139 = vmatprep.subr.bf16.mxu0 0
  %1140 = vmatpush1.bf16.xpose.msra.mxu0 0
  %1141 = vmatprep.subr.bf16.mxu0 0
  %1142 = vmatpush1.bf16.xpose.msra.mxu0 0
  %1143 = vmatprep.subr.bf16.mxu0 0
  %1144 = vmatpush1.bf16.xpose.msra.mxu0 0
  %1145 = vmatprep.subr.bf16.mxu0 0
  %1146 = vmatpush1.bf16.xpose.msra.mxu0 0
  %1147 = vmatprep.subr.bf16.mxu0 0
  %1148 = vmatpush1.bf16.xpose.msra.mxu0 0
  %1149 = vmatprep.subr.bf16.mxu0 0
  %1150 = vmatpush1.bf16.xpose.msra.mxu0 0
  %1151 = vmatprep.subr.bf16.mxu0 0
  %1152 = vmatpush1.bf16.xpose.msra.mxu0 0
  %1153 = vmatprep.subr.bf16.mxu0 0
  %1154 = vmatpush1.bf16.xpose.msra.mxu0 0
  %1155 = vmatprep.subr.bf16.mxu0 0
  %1156 = vmatpush1.bf16.xpose.msra.mxu0 0
  %1157 = vmatprep.subr.bf16.mxu0 0
  %1158 = vmatpush1.bf16.xpose.msra.mxu0 0
  %1159 = vmatprep.subr.bf16.mxu0 0
  %1160 = vmatpush1.bf16.xpose.msra.mxu0 0
  %1161 = vmatprep.subr.bf16.mxu0 0
  %1162 = vmatpush1.bf16.xpose.msra.mxu0 0
  %1163 = vmatprep.mubr.bf16.mxu0 0
  %1164 = vmatmul.mubr.bf16.gmra.mrb[0].mxu0 %v1126
  %v1165 = vpop.f32.mrb[0].mxu0
  %v1166 = vadd.f32 0.0, %v1165
  %v1167 = vpop.f32.mrb[0].mxu0
  %v1168 = vpop.f32.mrb[0].mxu0
  %v1169 = vadd.f32 0.0, %v1168
  %v1170 = vpop.f32.mrb[0].mxu0
  %1171 = vdwg.mxu0
  %1172 = vrot.lane.b32.xlu0 %v1070, 112
  %v1173 = vpop.permute.xlu0 %1172
  %1174 = vrot.lane.b32.xlu0 %v1070, 80
  %v1175 = vpop.permute.xlu0 %1174
  %v1177 = vsel %vm158, %v1173, 0
  %v1180 = vsel %vm158, %v1175, 0
  %1182 = vmatprep.subr.bf16.mxu0 0
  %1183 = vmatpush1.bf16.xpose.msra.mxu0 %v1180
  %1184 = vmatprep.subr.bf16.mxu0 0
  %1185 = vmatpush1.bf16.xpose.msra.mxu0 0
  %1186 = vmatprep.subr.bf16.mxu0 0
  %1187 = vmatpush1.bf16.xpose.msra.mxu0 0
  %1188 = vmatprep.subr.bf16.mxu0 0
  %1189 = vmatpush1.bf16.xpose.msra.mxu0 0
  %1190 = vmatprep.subr.bf16.mxu0 0
  %1191 = vmatpush1.bf16.xpose.msra.mxu0 0
  %1192 = vmatprep.subr.bf16.mxu0 0
  %1193 = vmatpush1.bf16.xpose.msra.mxu0 0
  %1194 = vmatprep.subr.bf16.mxu0 0
  %1195 = vmatpush1.bf16.xpose.msra.mxu0 0
  %1196 = vmatprep.subr.bf16.mxu0 0
  %1197 = vmatpush1.bf16.xpose.msra.mxu0 0
  %1198 = vmatprep.subr.bf16.mxu0 0
  %1199 = vmatpush1.bf16.xpose.msra.mxu0 0
  %1200 = vmatprep.subr.bf16.mxu0 0
  %1201 = vmatpush1.bf16.xpose.msra.mxu0 0
  %1202 = vmatprep.subr.bf16.mxu0 0
  %1203 = vmatpush1.bf16.xpose.msra.mxu0 0
  %1204 = vmatprep.subr.bf16.mxu0 0
  %1205 = vmatpush1.bf16.xpose.msra.mxu0 0
  %1206 = vmatprep.subr.bf16.mxu0 0
  %1207 = vmatpush1.bf16.xpose.msra.mxu0 0
  %1208 = vmatprep.subr.bf16.mxu0 0
  %1209 = vmatpush1.bf16.xpose.msra.mxu0 0
  %1210 = vmatprep.subr.bf16.mxu0 0
  %1211 = vmatpush1.bf16.xpose.msra.mxu0 0
  %1212 = vmatprep.subr.bf16.mxu0 0
  %1213 = vmatpush1.bf16.xpose.msra.mxu0 0
  %1214 = vmatprep.mubr.bf16.mxu0 0
  %1215 = vmatmul.mubr.bf16.gmra.mrb[0].mxu0 %v1177
  %v1216 = vpop.f32.mrb[0].mxu0
  %v1217 = vadd.f32 0.0, %v1216
  %v1218 = vpop.f32.mrb[0].mxu0
  %v1219 = vpop.f32.mrb[0].mxu0
  %v1220 = vadd.f32 0.0, %v1219
  %v1221 = vpop.f32.mrb[0].mxu0
  %1222 = vdwg.mxu0
  %1223 = vrot.lane.b32.xlu0 %v1070, 104
  %v1224 = vpop.permute.xlu0 %1223
  %1225 = vrot.lane.b32.xlu0 %v1070, 72
  %v1226 = vpop.permute.xlu0 %1225
  %v1228 = vsel %vm158, %v1224, 0
  %v1231 = vsel %vm158, %v1226, 0
  %1233 = vmatprep.subr.bf16.mxu0 0
  %1234 = vmatpush1.bf16.xpose.msra.mxu0 %v1231
  %1235 = vmatprep.subr.bf16.mxu0 0
  %1236 = vmatpush1.bf16.xpose.msra.mxu0 0
  %1237 = vmatprep.subr.bf16.mxu0 0
  %1238 = vmatpush1.bf16.xpose.msra.mxu0 0
  %1239 = vmatprep.subr.bf16.mxu0 0
  %1240 = vmatpush1.bf16.xpose.msra.mxu0 0
  %1241 = vmatprep.subr.bf16.mxu0 0
  %1242 = vmatpush1.bf16.xpose.msra.mxu0 0
  %1243 = vmatprep.subr.bf16.mxu0 0
  %1244 = vmatpush1.bf16.xpose.msra.mxu0 0
  %1245 = vmatprep.subr.bf16.mxu0 0
  %1246 = vmatpush1.bf16.xpose.msra.mxu0 0
  %1247 = vmatprep.subr.bf16.mxu0 0
  %1248 = vmatpush1.bf16.xpose.msra.mxu0 0
  %1249 = vmatprep.subr.bf16.mxu0 0
  %1250 = vmatpush1.bf16.xpose.msra.mxu0 0
  %1251 = vmatprep.subr.bf16.mxu0 0
  %1252 = vmatpush1.bf16.xpose.msra.mxu0 0
  %1253 = vmatprep.subr.bf16.mxu0 0
  %1254 = vmatpush1.bf16.xpose.msra.mxu0 0
  %1255 = vmatprep.subr.bf16.mxu0 0
  %1256 = vmatpush1.bf16.xpose.msra.mxu0 0
  %1257 = vmatprep.subr.bf16.mxu0 0
  %1258 = vmatpush1.bf16.xpose.msra.mxu0 0
  %1259 = vmatprep.subr.bf16.mxu0 0
  %1260 = vmatpush1.bf16.xpose.msra.mxu0 0
  %1261 = vmatprep.subr.bf16.mxu0 0
  %1262 = vmatpush1.bf16.xpose.msra.mxu0 0
  %1263 = vmatprep.subr.bf16.mxu0 0
  %1264 = vmatpush1.bf16.xpose.msra.mxu0 0
  %1265 = vmatprep.mubr.bf16.mxu0 0
  %1266 = vmatmul.mubr.bf16.gmra.mrb[0].mxu0 %v1228
  %v1267 = vpop.f32.mrb[0].mxu0
  %v1268 = vadd.f32 0.0, %v1267
  %v1269 = vpop.f32.mrb[0].mxu0
  %v1270 = vpop.f32.mrb[0].mxu0
  %v1271 = vadd.f32 0.0, %v1270
  %v1272 = vpop.f32.mrb[0].mxu0
  %1273 = vdwg.mxu0
  %v1274 = vmul.f32 %v1115, 0.35355338
  %v1275 = vmul.f32 %v1118, 0.35355338
  %v1276 = vmul.f32 %v1166, 0.35355338
  %v1277 = vmul.f32 %v1169, 0.35355338
  %v1278 = vmul.f32 %v1217, 0.35355338
  %v1279 = vmul.f32 %v1220, 0.35355338
  %v1280 = vmul.f32 %v1268, 0.35355338
  %v1281 = vmul.f32 %v1271, 0.35355338
  %v1282 = vadd.f32 %v1274, %v21
  %v1283 = vadd.f32 %v1275, %v22
  %v1284 = vadd.f32 %v1276, %v23
  %v1285 = vadd.f32 %v1277, %v24
  %v1286 = vadd.f32 %v1278, %v25
  %v1287 = vadd.f32 %v1279, %v26
  %v1288 = vadd.f32 %v1280, %v27
  %v1289 = vadd.f32 %v1281, %v28
  %v1290 = vsel %vm375, %v1282, -inf
  %1291 = vmax.xlane.f32.xlu0 %v1290
  %v1292 = vpop.xlane.xlu0 %1291
  %v1293 = vsel %vm375, %v1283, -inf
  %1294 = vmax.xlane.f32.xlu0 %v1293
  %v1295 = vpop.xlane.xlu0 %1294
  %v1296 = vsel %vm375, %v1284, -inf
  %1297 = vmax.xlane.f32.xlu0 %v1296
  %v1298 = vpop.xlane.xlu0 %1297
  %v1299 = vsel %vm375, %v1285, -inf
  %1300 = vmax.xlane.f32.xlu0 %v1299
  %v1301 = vpop.xlane.xlu0 %1300
  %v1302 = vsel %vm375, %v1286, -inf
  %1303 = vmax.xlane.f32.xlu0 %v1302
  %v1304 = vpop.xlane.xlu0 %1303
  %v1305 = vsel %vm375, %v1287, -inf
  %1306 = vmax.xlane.f32.xlu0 %v1305
  %v1307 = vpop.xlane.xlu0 %1306
  %v1308 = vsel %vm375, %v1288, -inf
  %1309 = vmax.xlane.f32.xlu0 %v1308
  %v1310 = vpop.xlane.xlu0 %1309
  %v1311 = vsel %vm375, %v1289, -inf
  %1312 = vmax.xlane.f32.xlu0 %v1311
  %v1313 = vpop.xlane.xlu0 %1312
  %v1314 = vsub.f32 %v1282, %v1292
  %v1315 = vsub.f32 %v1283, %v1295
  %v1316 = vsub.f32 %v1284, %v1298
  %v1317 = vsub.f32 %v1285, %v1301
  %v1318 = vsub.f32 %v1286, %v1304
  %v1319 = vsub.f32 %v1287, %v1307
  %v1320 = vsub.f32 %v1288, %v1310
  %v1321 = vsub.f32 %v1289, %v1313
  %v1322 = vmul.f32 %v1314, 1.442695
  %v1323 = vpow.pop %v1322
  %v1324 = vmul.f32 %v1315, 1.442695
  %v1325 = vpow.pop %v1324
  %v1326 = vmul.f32 %v1316, 1.442695
  %v1327 = vpow.pop %v1326
  %v1328 = vmul.f32 %v1317, 1.442695
  %v1329 = vpow.pop %v1328
  %v1330 = vmul.f32 %v1318, 1.442695
  %v1331 = vpow.pop %v1330
  %v1332 = vmul.f32 %v1319, 1.442695
  %v1333 = vpow.pop %v1332
  %v1334 = vmul.f32 %v1320, 1.442695
  %v1335 = vpow.pop %v1334
  %v1336 = vmul.f32 %v1321, 1.442695
  %v1337 = vpow.pop %v1336
  %v1338 = vsel %vm375, %v1323, 0.0
  %1339 = vadd.xlane.f32.xlu0 %v1338
  %v1340 = vpop.xlane.xlu0 %1339
  %v1341 = vsel %vm375, %v1325, 0.0
  %1342 = vadd.xlane.f32.xlu0 %v1341
  %v1343 = vpop.xlane.xlu0 %1342
  %v1344 = vsel %vm375, %v1327, 0.0
  %1345 = vadd.xlane.f32.xlu0 %v1344
  %v1346 = vpop.xlane.xlu0 %1345
  %v1347 = vsel %vm375, %v1329, 0.0
  %1348 = vadd.xlane.f32.xlu0 %v1347
  %v1349 = vpop.xlane.xlu0 %1348
  %v1350 = vsel %vm375, %v1331, 0.0
  %1351 = vadd.xlane.f32.xlu0 %v1350
  %v1352 = vpop.xlane.xlu0 %1351
  %v1353 = vsel %vm375, %v1333, 0.0
  %1354 = vadd.xlane.f32.xlu0 %v1353
  %v1355 = vpop.xlane.xlu0 %1354
  %v1356 = vsel %vm375, %v1335, 0.0
  %1357 = vadd.xlane.f32.xlu0 %v1356
  %v1358 = vpop.xlane.xlu0 %1357
  %v1359 = vsel %vm375, %v1337, 0.0
  %1360 = vadd.xlane.f32.xlu0 %v1359
  %v1361 = vpop.xlane.xlu0 %1360
  %v1362 = vrcp.pop %v1340
  %v1363 = vrcp.pop %v1343
  %v1364 = vrcp.pop %v1346
  %v1365 = vrcp.pop %v1349
  %v1366 = vrcp.pop %v1352
  %v1367 = vrcp.pop %v1355
  %v1368 = vrcp.pop %v1358
  %v1369 = vrcp.pop %v1361
  %v1370 = vmul.f32 %v1323, %v1362
  %v1371 = vmul.f32 %v1325, %v1363
  %v1372 = vmul.f32 %v1327, %v1364
  %v1373 = vmul.f32 %v1329, %v1365
  %v1374 = vmul.f32 %v1331, %v1366
  %v1375 = vmul.f32 %v1333, %v1367
  %v1376 = vmul.f32 %v1335, %v1368
  %v1377 = vmul.f32 %v1337, %v1369
  %v1378 = vpack.c.bf16 %v1371, %v1370
  %v1379 = vpack.c.bf16 %v1373, %v1372
  %v1380 = vpack.c.bf16 %v1375, %v1374
  %v1381 = vpack.c.bf16 %v1377, %v1376
  %1382 = vrot.lane.b32.xlu0 %v1070, 64
  %v1383 = vpop.permute.xlu0 %1382
  %v1386 = vsel %vm375, %v1378, 0
  %1388 = vmatprep.subr.bf16.mxu0 0
  %1389 = vmatpush1.bf16.msra.mxu0 %v1383
  %1390 = vmatprep.subr.bf16.mxu0 0
  %1391 = vmatpush1.bf16.msra.mxu0 0
  %1392 = vmatprep.subr.bf16.mxu0 0
  %1393 = vmatpush1.bf16.msra.mxu0 0
  %1394 = vmatprep.subr.bf16.mxu0 0
  %1395 = vmatpush1.bf16.msra.mxu0 0
  %1396 = vmatprep.subr.bf16.mxu0 0
  %1397 = vmatpush1.bf16.msra.mxu0 0
  %1398 = vmatprep.subr.bf16.mxu0 0
  %1399 = vmatpush1.bf16.msra.mxu0 0
  %1400 = vmatprep.subr.bf16.mxu0 0
  %1401 = vmatpush1.bf16.msra.mxu0 0
  %1402 = vmatprep.subr.bf16.mxu0 0
  %1403 = vmatpush1.bf16.msra.mxu0 0
  %1404 = vmatprep.subr.bf16.mxu0 0
  %1405 = vmatpush1.bf16.msra.mxu0 0
  %1406 = vmatprep.subr.bf16.mxu0 0
  %1407 = vmatpush1.bf16.msra.mxu0 0
  %1408 = vmatprep.subr.bf16.mxu0 0
  %1409 = vmatpush1.bf16.msra.mxu0 0
  %1410 = vmatprep.subr.bf16.mxu0 0
  %1411 = vmatpush1.bf16.msra.mxu0 0
  %1412 = vmatprep.subr.bf16.mxu0 0
  %1413 = vmatpush1.bf16.msra.mxu0 0
  %1414 = vmatprep.subr.bf16.mxu0 0
  %1415 = vmatpush1.bf16.msra.mxu0 0
  %1416 = vmatprep.subr.bf16.mxu0 0
  %1417 = vmatpush1.bf16.msra.mxu0 0
  %1418 = vmatprep.subr.bf16.mxu0 0
  %1419 = vmatpush1.bf16.msra.mxu0 0
  %1420 = vmatprep.mubr.bf16.mxu0 0
  %1421 = vmatmul.mubr.bf16.gmra.mrb[0].mxu0 %v1386
  %v1422 = vpop.f32.mrb[0].mxu0
  %v1423 = vadd.f32 0.0, %v1422
  %v1424 = vpop.f32.mrb[0].mxu0
  %v1425 = vpop.f32.mrb[0].mxu0
  %v1426 = vadd.f32 0.0, %v1425
  %v1427 = vpop.f32.mrb[0].mxu0
  %1428 = vdwg.mxu0
  %1429 = vrot.lane.b32.xlu0 %v1070, 56
  %v1430 = vpop.permute.xlu0 %1429
  %v1433 = vsel %vm375, %v1379, 0
  %1435 = vmatprep.subr.bf16.mxu0 0
  %1436 = vmatpush1.bf16.msra.mxu0 %v1430
  %1437 = vmatprep.subr.bf16.mxu0 0
  %1438 = vmatpush1.bf16.msra.mxu0 0
  %1439 = vmatprep.subr.bf16.mxu0 0
  %1440 = vmatpush1.bf16.msra.mxu0 0
  %1441 = vmatprep.subr.bf16.mxu0 0
  %1442 = vmatpush1.bf16.msra.mxu0 0
  %1443 = vmatprep.subr.bf16.mxu0 0
  %1444 = vmatpush1.bf16.msra.mxu0 0
  %1445 = vmatprep.subr.bf16.mxu0 0
  %1446 = vmatpush1.bf16.msra.mxu0 0
  %1447 = vmatprep.subr.bf16.mxu0 0
  %1448 = vmatpush1.bf16.msra.mxu0 0
  %1449 = vmatprep.subr.bf16.mxu0 0
  %1450 = vmatpush1.bf16.msra.mxu0 0
  %1451 = vmatprep.subr.bf16.mxu0 0
  %1452 = vmatpush1.bf16.msra.mxu0 0
  %1453 = vmatprep.subr.bf16.mxu0 0
  %1454 = vmatpush1.bf16.msra.mxu0 0
  %1455 = vmatprep.subr.bf16.mxu0 0
  %1456 = vmatpush1.bf16.msra.mxu0 0
  %1457 = vmatprep.subr.bf16.mxu0 0
  %1458 = vmatpush1.bf16.msra.mxu0 0
  %1459 = vmatprep.subr.bf16.mxu0 0
  %1460 = vmatpush1.bf16.msra.mxu0 0
  %1461 = vmatprep.subr.bf16.mxu0 0
  %1462 = vmatpush1.bf16.msra.mxu0 0
  %1463 = vmatprep.subr.bf16.mxu0 0
  %1464 = vmatpush1.bf16.msra.mxu0 0
  %1465 = vmatprep.subr.bf16.mxu0 0
  %1466 = vmatpush1.bf16.msra.mxu0 0
  %1467 = vmatprep.mubr.bf16.mxu0 0
  %1468 = vmatmul.mubr.bf16.gmra.mrb[0].mxu0 %v1433
  %v1469 = vpop.f32.mrb[0].mxu0
  %v1470 = vadd.f32 0.0, %v1469
  %v1471 = vpop.f32.mrb[0].mxu0
  %v1472 = vpop.f32.mrb[0].mxu0
  %v1473 = vadd.f32 0.0, %v1472
  %v1474 = vpop.f32.mrb[0].mxu0
  %1475 = vdwg.mxu0
  %1476 = vrot.lane.b32.xlu0 %v1070, 48
  %v1477 = vpop.permute.xlu0 %1476
  %v1480 = vsel %vm375, %v1380, 0
  %1482 = vmatprep.subr.bf16.mxu0 0
  %1483 = vmatpush1.bf16.msra.mxu0 %v1477
  %1484 = vmatprep.subr.bf16.mxu0 0
  %1485 = vmatpush1.bf16.msra.mxu0 0
  %1486 = vmatprep.subr.bf16.mxu0 0
  %1487 = vmatpush1.bf16.msra.mxu0 0
  %1488 = vmatprep.subr.bf16.mxu0 0
  %1489 = vmatpush1.bf16.msra.mxu0 0
  %1490 = vmatprep.subr.bf16.mxu0 0
  %1491 = vmatpush1.bf16.msra.mxu0 0
  %1492 = vmatprep.subr.bf16.mxu0 0
  %1493 = vmatpush1.bf16.msra.mxu0 0
  %1494 = vmatprep.subr.bf16.mxu0 0
  %1495 = vmatpush1.bf16.msra.mxu0 0
  %1496 = vmatprep.subr.bf16.mxu0 0
  %1497 = vmatpush1.bf16.msra.mxu0 0
  %1498 = vmatprep.subr.bf16.mxu0 0
  %1499 = vmatpush1.bf16.msra.mxu0 0
  %1500 = vmatprep.subr.bf16.mxu0 0
  %1501 = vmatpush1.bf16.msra.mxu0 0
  %1502 = vmatprep.subr.bf16.mxu0 0
  %1503 = vmatpush1.bf16.msra.mxu0 0
  %1504 = vmatprep.subr.bf16.mxu0 0
  %1505 = vmatpush1.bf16.msra.mxu0 0
  %1506 = vmatprep.subr.bf16.mxu0 0
  %1507 = vmatpush1.bf16.msra.mxu0 0
  %1508 = vmatprep.subr.bf16.mxu0 0
  %1509 = vmatpush1.bf16.msra.mxu0 0
  %1510 = vmatprep.subr.bf16.mxu0 0
  %1511 = vmatpush1.bf16.msra.mxu0 0
  %1512 = vmatprep.subr.bf16.mxu0 0
  %1513 = vmatpush1.bf16.msra.mxu0 0
  %1514 = vmatprep.mubr.bf16.mxu0 0
  %1515 = vmatmul.mubr.bf16.gmra.mrb[0].mxu0 %v1480
  %v1516 = vpop.f32.mrb[0].mxu0
  %v1517 = vadd.f32 0.0, %v1516
  %v1518 = vpop.f32.mrb[0].mxu0
  %v1519 = vpop.f32.mrb[0].mxu0
  %v1520 = vadd.f32 0.0, %v1519
  %v1521 = vpop.f32.mrb[0].mxu0
  %1522 = vdwg.mxu0
  %1523 = vrot.lane.b32.xlu0 %v1070, 40
  %v1524 = vpop.permute.xlu0 %1523
  %v1527 = vsel %vm375, %v1381, 0
  %1529 = vmatprep.subr.bf16.mxu0 0
  %1530 = vmatpush1.bf16.msra.mxu0 %v1524
  %1531 = vmatprep.subr.bf16.mxu0 0
  %1532 = vmatpush1.bf16.msra.mxu0 0
  %1533 = vmatprep.subr.bf16.mxu0 0
  %1534 = vmatpush1.bf16.msra.mxu0 0
  %1535 = vmatprep.subr.bf16.mxu0 0
  %1536 = vmatpush1.bf16.msra.mxu0 0
  %1537 = vmatprep.subr.bf16.mxu0 0
  %1538 = vmatpush1.bf16.msra.mxu0 0
  %1539 = vmatprep.subr.bf16.mxu0 0
  %1540 = vmatpush1.bf16.msra.mxu0 0
  %1541 = vmatprep.subr.bf16.mxu0 0
  %1542 = vmatpush1.bf16.msra.mxu0 0
  %1543 = vmatprep.subr.bf16.mxu0 0
  %1544 = vmatpush1.bf16.msra.mxu0 0
  %1545 = vmatprep.subr.bf16.mxu0 0
  %1546 = vmatpush1.bf16.msra.mxu0 0
  %1547 = vmatprep.subr.bf16.mxu0 0
  %1548 = vmatpush1.bf16.msra.mxu0 0
  %1549 = vmatprep.subr.bf16.mxu0 0
  %1550 = vmatpush1.bf16.msra.mxu0 0
  %1551 = vmatprep.subr.bf16.mxu0 0
  %1552 = vmatpush1.bf16.msra.mxu0 0
  %1553 = vmatprep.subr.bf16.mxu0 0
  %1554 = vmatpush1.bf16.msra.mxu0 0
  %1555 = vmatprep.subr.bf16.mxu0 0
  %1556 = vmatpush1.bf16.msra.mxu0 0
  %1557 = vmatprep.subr.bf16.mxu0 0
  %1558 = vmatpush1.bf16.msra.mxu0 0
  %1559 = vmatprep.subr.bf16.mxu0 0
  %1560 = vmatpush1.bf16.msra.mxu0 0
  %1561 = vmatprep.mubr.bf16.mxu0 0
  %1562 = vmatmul.mubr.bf16.gmra.mrb[0].mxu0 %v1527
  %v1563 = vpop.f32.mrb[0].mxu0
  %v1564 = vadd.f32 0.0, %v1563
  %v1565 = vpop.f32.mrb[0].mxu0
  %v1566 = vpop.f32.mrb[0].mxu0
  %v1567 = vadd.f32 0.0, %v1566
  %v1568 = vpop.f32.mrb[0].mxu0
  %1569 = vdwg.mxu0
  %1572 = vrot.lane.b32.xlu0 %v1470, 8
  %v1573 = vpop.permute.xlu0 %1572
  %1574 = vrot.lane.b32.xlu0 %v1473, 8
  %v1575 = vpop.permute.xlu0 %1574
  %1580 = vrot.lane.b32.xlu0 %v1517, 16
  %v1581 = vpop.permute.xlu0 %1580
  %1582 = vrot.lane.b32.xlu0 %v1520, 16
  %v1583 = vpop.permute.xlu0 %1582
  %1588 = vrot.lane.b32.xlu0 %v1564, 24
  %v1589 = vpop.permute.xlu0 %1588
  %1590 = vrot.lane.b32.xlu0 %v1567, 24
  %v1591 = vpop.permute.xlu0 %1590
  %v1594 = vsel %vm158, %v1423, %v1573
  %v1595 = vsel %vm158, %v1426, %v1575
  %v1596 = vsel %vm375, %v1594, %v1581
  %v1597 = vsel %vm375, %v1595, %v1583
  %v1598 = vsel %vm684, %v1596, %v1589
  %v1599 = vsel %vm684, %v1597, %v1591
  %v1600 = vpack.c.bf16 %v1599, %v1598
  %v1605 = vunpack.c.l.b16 %v991
  %v1606 = vunpack.c.l.b16 %v992
  %v1607 = vunpack.c.l.b16 %v993
  %v1608 = vunpack.c.l.b16 %v994
  %v1609 = vpack.c.b16 %v1606, %v1605
  %v1610 = vpack.c.b16 %v1608, %v1607
  %v1614 = vsel %vm31, %v1600, 0
  %1616 = vmatprep.subr.bf16.mxu0 0
  %1617 = vmatpush1.bf16.msra.mxu0 %v1609
  %1618 = vmatprep.subr.bf16.mxu0 0
  %1619 = vmatpush1.bf16.msra.mxu0 %v1610
  %1620 = vmatprep.subr.bf16.mxu0 0
  %1621 = vmatpush1.bf16.msra.mxu0 0
  %1622 = vmatprep.subr.bf16.mxu0 0
  %1623 = vmatpush1.bf16.msra.mxu0 0
  %1624 = vmatprep.subr.bf16.mxu0 0
  %1625 = vmatpush1.bf16.msra.mxu0 0
  %1626 = vmatprep.subr.bf16.mxu0 0
  %1627 = vmatpush1.bf16.msra.mxu0 0
  %1628 = vmatprep.subr.bf16.mxu0 0
  %1629 = vmatpush1.bf16.msra.mxu0 0
  %1630 = vmatprep.subr.bf16.mxu0 0
  %1631 = vmatpush1.bf16.msra.mxu0 0
  %1632 = vmatprep.subr.bf16.mxu0 0
  %1633 = vmatpush1.bf16.msra.mxu0 0
  %1634 = vmatprep.subr.bf16.mxu0 0
  %1635 = vmatpush1.bf16.msra.mxu0 0
  %1636 = vmatprep.subr.bf16.mxu0 0
  %1637 = vmatpush1.bf16.msra.mxu0 0
  %1638 = vmatprep.subr.bf16.mxu0 0
  %1639 = vmatpush1.bf16.msra.mxu0 0
  %1640 = vmatprep.subr.bf16.mxu0 0
  %1641 = vmatpush1.bf16.msra.mxu0 0
  %1642 = vmatprep.subr.bf16.mxu0 0
  %1643 = vmatpush1.bf16.msra.mxu0 0
  %1644 = vmatprep.subr.bf16.mxu0 0
  %1645 = vmatpush1.bf16.msra.mxu0 0
  %1646 = vmatprep.subr.bf16.mxu0 0
  %1647 = vmatpush1.bf16.msra.mxu0 0
  %1648 = vmatprep.mubr.bf16.mxu0 0
  %1649 = vmatmul.mubr.bf16.gmra.mrb[0].mxu0 %v1614
  %v1650 = vpop.f32.mrb[0].mxu0
  %v1651 = vadd.f32 0.0, %v1650
  %v1652 = vpop.f32.mrb[0].mxu0
  %v1653 = vpop.f32.mrb[0].mxu0
  %v1654 = vadd.f32 0.0, %v1653
  %v1655 = vpop.f32.mrb[0].mxu0
  %1656 = vdwg.mxu0
  %v1657 = vlaneseq
  %v1658 = vshrl.u32 %v1657, 7
  %v1659 = vsub.s32 3, %v1658
  %v1660 = vrot.slane %v19, %v1659
  %v1661 = vadd.f32 %v1651, %v1660
  %v1662 = vadd.f32 %v1654, %v1660
  %v1663 = vadd.f32 %v1661, %v985
  %v1664 = vadd.f32 %v1662, %v986
  %v1665 = vsel %vm31, %v1663, 0.0
  %1666 = vadd.xlane.f32.xlu0 %v1665
  %v1667 = vpop.xlane.xlu0 %1666
  %v1668 = vsel %vm31, %v1664, 0.0
  %1669 = vadd.xlane.f32.xlu0 %v1668
  %v1670 = vpop.xlane.xlu0 %1669
  %v1671 = vmul.f32 %v1667, %v38
  %v1672 = vmul.f32 %v1670, %v38
  %v1673 = vsub.f32 %v1663, %v1671
  %v1674 = vsub.f32 %v1664, %v1672
  %v1675 = vmul.f32 %v1673, %v1673
  %v1676 = vmul.f32 %v1674, %v1674
  %v1677 = vsel %vm31, %v1675, 0.0
  %1678 = vadd.xlane.f32.xlu0 %v1677
  %v1679 = vpop.xlane.xlu0 %1678
  %v1680 = vsel %vm31, %v1676, 0.0
  %1681 = vadd.xlane.f32.xlu0 %v1680
  %v1682 = vpop.xlane.xlu0 %1681
  %v1683 = vmul.f32 %v1679, %v38
  %v1684 = vmul.f32 %v1682, %v38
  %v1685 = vadd.f32 %v1683, 1e-12
  %v1686 = vadd.f32 %v1684, 1e-12
  %v1687 = vrsqrt.pop %v1685
  %v1688 = vrsqrt.pop %v1686
  %v1689 = vmul.f32 %v1673, %v1687
  %v1690 = vmul.f32 %v1674, %v1688
  %v1691 = vlaneseq
  %v1692 = vshrl.u32 %v1691, 7
  %v1693 = vsub.s32 4, %v1692
  %v1694 = vrot.slane %v19, %v1693
  %v1695 = vmul.f32 %v1689, %v1694
  %v1696 = vmul.f32 %v1690, %v1694
  %v1697 = vlaneseq
  %v1698 = vshrl.u32 %v1697, 7
  %v1699 = vsub.s32 5, %v1698
  %v1700 = vrot.slane %v19, %v1699
  %v1701 = vadd.f32 %v1695, %v1700
  %v1702 = vadd.f32 %v1696, %v1700
  %v1703 = vpack.c.bf16 %v1702, %v1701
  %v1708 = vunpack.c.l.b16 %v995
  %v1709 = vunpack.c.l.b16 %v996
  %v1710 = vunpack.c.l.b16 %v997
  %v1711 = vunpack.c.l.b16 %v998
  %v1712 = vpack.c.b16 %v1709, %v1708
  %v1713 = vpack.c.b16 %v1711, %v1710
  %v1717 = vsel %vm31, %v1703, 0
  %1719 = vmatprep.subr.bf16.mxu0 0
  %1720 = vmatpush1.bf16.msra.mxu0 %v1712
  %1721 = vmatprep.subr.bf16.mxu0 0
  %1722 = vmatpush1.bf16.msra.mxu0 %v1713
  %1723 = vmatprep.subr.bf16.mxu0 0
  %1724 = vmatpush1.bf16.msra.mxu0 0
  %1725 = vmatprep.subr.bf16.mxu0 0
  %1726 = vmatpush1.bf16.msra.mxu0 0
  %1727 = vmatprep.subr.bf16.mxu0 0
  %1728 = vmatpush1.bf16.msra.mxu0 0
  %1729 = vmatprep.subr.bf16.mxu0 0
  %1730 = vmatpush1.bf16.msra.mxu0 0
  %1731 = vmatprep.subr.bf16.mxu0 0
  %1732 = vmatpush1.bf16.msra.mxu0 0
  %1733 = vmatprep.subr.bf16.mxu0 0
  %1734 = vmatpush1.bf16.msra.mxu0 0
  %1735 = vmatprep.subr.bf16.mxu0 0
  %1736 = vmatpush1.bf16.msra.mxu0 0
  %1737 = vmatprep.subr.bf16.mxu0 0
  %1738 = vmatpush1.bf16.msra.mxu0 0
  %1739 = vmatprep.subr.bf16.mxu0 0
  %1740 = vmatpush1.bf16.msra.mxu0 0
  %1741 = vmatprep.subr.bf16.mxu0 0
  %1742 = vmatpush1.bf16.msra.mxu0 0
  %1743 = vmatprep.subr.bf16.mxu0 0
  %1744 = vmatpush1.bf16.msra.mxu0 0
  %1745 = vmatprep.subr.bf16.mxu0 0
  %1746 = vmatpush1.bf16.msra.mxu0 0
  %1747 = vmatprep.subr.bf16.mxu0 0
  %1748 = vmatpush1.bf16.msra.mxu0 0
  %1749 = vmatprep.subr.bf16.mxu0 0
  %1750 = vmatpush1.bf16.msra.mxu0 0
  %1751 = vmatprep.mubr.bf16.mxu0 0
  %1752 = vmatmul.mubr.bf16.gmra.mrb[0].mxu0 %v1717
  %v1753 = vpop.f32.mrb[0].mxu0
  %v1754 = vadd.f32 0.0, %v1753
  %v1755 = vpop.f32.mrb[0].mxu0
  %v1756 = vpop.f32.mrb[0].mxu0
  %v1757 = vadd.f32 0.0, %v1756
  %v1758 = vpop.f32.mrb[0].mxu0
  %1759 = vdwg.mxu0
  %v1760 = vlaneseq
  %v1761 = vshrl.u32 %v1760, 7
  %v1762 = vsub.s32 6, %v1761
  %v1763 = vrot.slane %v19, %v1762
  %v1764 = vadd.f32 %v1754, %v1763
  %v1765 = vadd.f32 %v1757, %v1763
  %v1766 = vmul.f32 %v1764, %v1764
  %v1767 = vmul.f32 %v1765, %v1765
  %v1768 = vmul.f32 %v1764, %v1766
  %v1769 = vmul.f32 %v1765, %v1767
  %v1770 = vmul.f32 %v1768, 0.044715
  %v1771 = vmul.f32 %v1769, 0.044715
  %v1772 = vadd.f32 %v1764, %v1770
  %v1773 = vadd.f32 %v1765, %v1771
  %v1774 = vmul.f32 %v1772, 0.7978846
  %v1775 = vmul.f32 %v1773, 0.7978846
  %v1776 = vtanh.pop %v1774
  %v1777 = vtanh.pop %v1775
  %v1778 = vadd.f32 %v1776, 1.0
  %v1779 = vadd.f32 %v1777, 1.0
  %v1780 = vmul.f32 %v1778, 0.5
  %v1781 = vmul.f32 %v1779, 0.5
  %v1782 = vmul.f32 %v1764, %v1780
  %v1783 = vmul.f32 %v1765, %v1781
  %v1784 = vpack.c.bf16 %v1783, %v1782
  %v1793 = vunpack.c.l.b16 %v999
  %v1794 = vunpack.c.l.b16 %v1000
  %v1795 = vunpack.c.l.b16 %v1001
  %v1796 = vunpack.c.l.b16 %v1002
  %v1797 = vunpack.c.l.b16 %v1003
  %v1798 = vunpack.c.l.b16 %v1004
  %v1799 = vunpack.c.l.b16 %v1005
  %v1800 = vunpack.c.l.b16 %v1006
  %v1801 = vpack.c.b16 %v1794, %v1793
  %v1802 = vpack.c.b16 %v1796, %v1795
  %v1803 = vpack.c.b16 %v1798, %v1797
  %v1804 = vpack.c.b16 %v1800, %v1799
  %v1810 = vsel %vm896, %v1784, 0
  %1812 = vmatprep.subr.bf16.mxu0 0
  %1813 = vmatpush1.bf16.msra.mxu0 %v1801
  %1814 = vmatprep.subr.bf16.mxu0 0
  %1815 = vmatpush1.bf16.msra.mxu0 %v1802
  %1816 = vmatprep.subr.bf16.mxu0 0
  %1817 = vmatpush1.bf16.msra.mxu0 %v1803
  %1818 = vmatprep.subr.bf16.mxu0 0
  %1819 = vmatpush1.bf16.msra.mxu0 %v1804
  %1820 = vmatprep.subr.bf16.mxu0 0
  %1821 = vmatpush1.bf16.msra.mxu0 0
  %1822 = vmatprep.subr.bf16.mxu0 0
  %1823 = vmatpush1.bf16.msra.mxu0 0
  %1824 = vmatprep.subr.bf16.mxu0 0
  %1825 = vmatpush1.bf16.msra.mxu0 0
  %1826 = vmatprep.subr.bf16.mxu0 0
  %1827 = vmatpush1.bf16.msra.mxu0 0
  %1828 = vmatprep.subr.bf16.mxu0 0
  %1829 = vmatpush1.bf16.msra.mxu0 0
  %1830 = vmatprep.subr.bf16.mxu0 0
  %1831 = vmatpush1.bf16.msra.mxu0 0
  %1832 = vmatprep.subr.bf16.mxu0 0
  %1833 = vmatpush1.bf16.msra.mxu0 0
  %1834 = vmatprep.subr.bf16.mxu0 0
  %1835 = vmatpush1.bf16.msra.mxu0 0
  %1836 = vmatprep.subr.bf16.mxu0 0
  %1837 = vmatpush1.bf16.msra.mxu0 0
  %1838 = vmatprep.subr.bf16.mxu0 0
  %1839 = vmatpush1.bf16.msra.mxu0 0
  %1840 = vmatprep.subr.bf16.mxu0 0
  %1841 = vmatpush1.bf16.msra.mxu0 0
  %1842 = vmatprep.subr.bf16.mxu0 0
  %1843 = vmatpush1.bf16.msra.mxu0 0
  %1844 = vmatprep.mubr.bf16.mxu0 0
  %1845 = vmatmul.mubr.bf16.gmra.mrb[0].mxu0 %v1810
  %v1846 = vpop.f32.mrb[0].mxu0
  %v1847 = vadd.f32 0.0, %v1846
  %v1848 = vpop.f32.mrb[0].mxu0
  %v1849 = vpop.f32.mrb[0].mxu0
  %v1850 = vadd.f32 0.0, %v1849
  %v1851 = vpop.f32.mrb[0].mxu0
  %1852 = vdwg.mxu0
  %v1853 = vlaneseq
  %v1854 = vshrl.u32 %v1853, 7
  %v1855 = vsub.s32 7, %v1854
  %v1856 = vrot.slane %v19, %v1855
  %v1857 = vadd.f32 %v1847, %v1856
  %v1858 = vadd.f32 %v1850, %v1856
  %v1859 = vadd.f32 %v1857, %v1701
  %v1860 = vadd.f32 %v1858, %v1702
  %v1861 = vsel %vm31, %v1859, 0.0
  %1862 = vadd.xlane.f32.xlu0 %v1861
  %v1863 = vpop.xlane.xlu0 %1862
  %v1864 = vsel %vm31, %v1860, 0.0
  %1865 = vadd.xlane.f32.xlu0 %v1864
  %v1866 = vpop.xlane.xlu0 %1865
  %v1867 = vmul.f32 %v1863, %v38
  %v1868 = vmul.f32 %v1866, %v38
  %v1869 = vsub.f32 %v1859, %v1867
  %v1870 = vsub.f32 %v1860, %v1868
  %v1871 = vmul.f32 %v1869, %v1869
  %v1872 = vmul.f32 %v1870, %v1870
  %v1873 = vsel %vm31, %v1871, 0.0
  %1874 = vadd.xlane.f32.xlu0 %v1873
  %v1875 = vpop.xlane.xlu0 %1874
  %v1876 = vsel %vm31, %v1872, 0.0
  %1877 = vadd.xlane.f32.xlu0 %v1876
  %v1878 = vpop.xlane.xlu0 %1877
  %v1879 = vmul.f32 %v1875, %v38
  %v1880 = vmul.f32 %v1878, %v38
  %v1881 = vadd.f32 %v1879, 1e-12
  %v1882 = vadd.f32 %v1880, 1e-12
  %v1883 = vrsqrt.pop %v1881
  %v1884 = vrsqrt.pop %v1882
  %v1885 = vmul.f32 %v1869, %v1883
  %v1886 = vmul.f32 %v1870, %v1884
  %v1887 = vlaneseq
  %v1888 = vshrl.u32 %v1887, 7
  %v1889 = vsub.s32 0, %v1888
  %v1890 = vrot.slane %v20, %v1889
  %v1891 = vmul.f32 %v1885, %v1890
  %v1892 = vmul.f32 %v1886, %v1890
  %v1893 = vlaneseq
  %v1894 = vshrl.u32 %v1893, 7
  %v1895 = vsub.s32 1, %v1894
  %v1896 = vrot.slane %v20, %v1895
  %v1897 = vadd.f32 %v1891, %v1896
  %v1898 = vadd.f32 %v1892, %v1896
  %v1899 = vld [vmem:[%s2 + $0xa0] sm:$0xf]
  %v1900 = vld [vmem:[%s2 + $0xa4] sm:$0xf]
  %v1901 = vld [vmem:[%s2 + $0xa8] sm:$0xf]
  %v1902 = vld [vmem:[%s2 + $0xac] sm:$0xf]
  %v1903 = vpack.c.bf16 %v1898, %v1897
  %v1904 = vlaneseq
  %v1905 = vshrl.u32 %v1904, 7
  %v1906 = vsub.s32 2, %v1905
  %v1907 = vrot.slane %v20, %v1906
  %v1912 = vunpack.c.l.b16 %v1899
  %v1913 = vunpack.c.l.b16 %v1900
  %v1914 = vunpack.c.l.b16 %v1901
  %v1915 = vunpack.c.l.b16 %v1902
  %v1916 = vpack.c.b16 %v1913, %v1912
  %v1917 = vpack.c.b16 %v1915, %v1914
  %v1921 = vsel %vm31, %v1903, 0
  %1923 = vmatprep.subr.bf16.mxu0 0
  %1924 = vmatpush1.bf16.msra.mxu0 %v1916
  %1925 = vmatprep.subr.bf16.mxu0 0
  %1926 = vmatpush1.bf16.msra.mxu0 %v1917
  %1927 = vmatprep.subr.bf16.mxu0 0
  %1928 = vmatpush1.bf16.msra.mxu0 0
  %1929 = vmatprep.subr.bf16.mxu0 0
  %1930 = vmatpush1.bf16.msra.mxu0 0
  %1931 = vmatprep.subr.bf16.mxu0 0
  %1932 = vmatpush1.bf16.msra.mxu0 0
  %1933 = vmatprep.subr.bf16.mxu0 0
  %1934 = vmatpush1.bf16.msra.mxu0 0
  %1935 = vmatprep.subr.bf16.mxu0 0
  %1936 = vmatpush1.bf16.msra.mxu0 0
  %1937 = vmatprep.subr.bf16.mxu0 0
  %1938 = vmatpush1.bf16.msra.mxu0 0
  %1939 = vmatprep.subr.bf16.mxu0 0
  %1940 = vmatpush1.bf16.msra.mxu0 0
  %1941 = vmatprep.subr.bf16.mxu0 0
  %1942 = vmatpush1.bf16.msra.mxu0 0
  %1943 = vmatprep.subr.bf16.mxu0 0
  %1944 = vmatpush1.bf16.msra.mxu0 0
  %1945 = vmatprep.subr.bf16.mxu0 0
  %1946 = vmatpush1.bf16.msra.mxu0 0
  %1947 = vmatprep.subr.bf16.mxu0 0
  %1948 = vmatpush1.bf16.msra.mxu0 0
  %1949 = vmatprep.subr.bf16.mxu0 0
  %1950 = vmatpush1.bf16.msra.mxu0 0
  %1951 = vmatprep.subr.bf16.mxu0 0
  %1952 = vmatpush1.bf16.msra.mxu0 0
  %1953 = vmatprep.subr.bf16.mxu0 0
  %1954 = vmatpush1.bf16.msra.mxu0 0
  %1955 = vmatprep.mubr.bf16.mxu0 0
  %1956 = vmatmul.mubr.bf16.gmra.mrb[0].mxu0 %v1921
  %v1957 = vpop.f32.mrb[0].mxu0
  %v1958 = vadd.f32 %v1907, %v1957
  %v1959 = vpop.f32.mrb[0].mxu0
  %v1960 = vpop.f32.mrb[0].mxu0
  %v1961 = vadd.f32 %v1907, %v1960
  %v1962 = vpop.f32.mrb[0].mxu0
  %1963 = vdwg.mxu0
  %1964 = vst [vmem:[%s4] sm:$0xff] %v1958
  %1965 = vst [vmem:[%s4 + $0x8] sm:$0xff] %v1961
  // Predicated region
  $region18: #{model_forward.1} parent=0 // pred_check
    _
  $region19: #{model_forward.1} parent=0 // pred_check_branch
    %1967 = sbr.rel (0) target = $region21
  $region20: #{model_forward.1} parent=0 // pred_region
    _
  $region21: #{model_forward.1} parent=0 // pred_fallthru
    _
  // Predicated region
  $region22: #{model_forward.1} parent=0 // pred_check
    _
  $region23: #{model_forward.1} parent=0 // pred_check_branch
    %1969 = sbr.rel (0) target = $region25
  $region24: #{model_forward.1} parent=0 // pred_region
    _
  $region25: #{model_forward.1} parent=0 // pred_fallthru
    _

</llo_original>
